<compile_context>
chip_gen: v7x
topology: tpu7x:2x2x1
jax: 0.10.0
libtpu: 0.0.40
codegen_flags: <defaults>
</compile_context>

<pallas_src>
import functools

import jax
import jax.numpy as jnp
from jax.experimental import pallas as pl
from jax.experimental.pallas import tpu as pltpu

LANE = 128


def _round_up(x, m):
    return (x + m - 1) // m * m


def _upsample_conv_kernel(x_ref, w_ref, b_ref, o_ref, *, H, W, Cin):
    """Fused nearest-x2 upsample + 3x3 conv (pad=1) for a block of Bt images.

    x_ref: (Bt, H+1, W+2, 2*Cin) bf16  row-pair-packed, zero-ring-padded source
    w_ref: (2, 6*Cin, Np)        bf16  folded weights; K order = (col window c, row tap a, ci)
    b_ref: (1, Np)               f32   bias tiled over the two column parities
    o_ref: (Bt, 2, H*W, Np)      f32   axis1 = row parity, lanes = (col parity, co)
    """
    Bt = x_ref.shape[0]
    HW = H * W
    K = 2 * Cin
    Np = o_ref.shape[-1]
    bias = b_ref[...]                               # (1, Np) f32, hoisted

    for py in range(2):                             # output row parity
        acc = bias                                  # bias folded into accumulator init
        for c in range(3):                          # unique shifted column window
            lhs = x_ref[:, py:py + H, c:c + W, :].reshape(Bt * HW, K)
            acc = acc + jnp.dot(lhs, w_ref[py, c * K:(c + 1) * K, :],
                                preferred_element_type=jnp.float32)
        o_ref[:, py, :, :] = acc.reshape(Bt, HW, Np)


def upsample_forward(x_nchw, w_oihw, bias, *, block_b=None):
    """Equivalent of Upsample.forward: interpolate(x, 2, 'nearest') -> Conv2d 3x3 pad=1.

    x_nchw: (B, Cin, H, W) f32,  w_oihw: (Cout, Cin, 3, 3),  bias: (Cout,)
    returns (B, Cout, 2H, 2W) f32.
    """
    B, Cin, H, W = x_nchw.shape
    Cout = w_oihw.shape[0]
    HW = H * W
    K = 2 * Cin                                    # row-tap-packed contraction dim
    Np = _round_up(2 * Cout, LANE)                 # lane-dense output (col parities packed)

    # --- inputs: NCHW -> NHWC, 1-pixel zero ring (realizes pad=1 in upsampled space),
    # then pack each padded row with its successor along channels (K = 2*Cin dense).
    x = jnp.transpose(x_nchw, (0, 2, 3, 1))
    xp = jnp.pad(x, ((0, 0), (1, 1), (1, 1), (0, 0)))
    xrow = jnp.concatenate([xp[:, :-1], xp[:, 1:]], axis=-1).astype(jnp.bfloat16)
    # xrow: (B, H+1, W+2, 2*Cin)

    # --- fold the 3x3 kernel (tiny, once, f32):
    # W_big[py][(c,a) K-block, (px) N-block] = sum_{ky in G[py][a], kx in G[px][c-px]} w[ky,kx]
    w = jnp.transpose(w_oihw, (2, 3, 1, 0)).astype(jnp.float32)   # (ky, kx, ci, co)
    G = (((0,), (1, 2)), ((0, 1), (2,)))                          # [parity][tap] -> ky/kx set
    zblk = jnp.zeros((Cin, Cout), jnp.float32)

    def fold(py, px, a, tb):
        return sum(w[ky, kx] for ky in G[py][a] for kx in G[px][tb])

    wmats = []
    for py in range(2):
        nblocks = []
        for px in range(2):                         # output column parity (N block)
            kblocks = []
            for c in range(3):                      # column window (K block, major)
                tb = c - px                         # column tap index, if this window feeds px
                for a in range(2):                  # row tap (K block, minor) - matches xrow packing
                    kblocks.append(fold(py, px, a, tb) if 0 <= tb <= 1 else zblk)
            nblocks.append(jnp.concatenate(kblocks, axis=0))      # (6*Cin, Cout)
        wmats.append(jnp.concatenate(nblocks, axis=1))            # (6*Cin, 2*Cout)
    wf = jnp.stack(wmats)                                         # (2, 6*Cin, 2*Cout)
    wf = jnp.pad(wf, ((0, 0), (0, 0), (0, Np - 2 * Cout))).astype(jnp.bfloat16)

    bp = jnp.pad(jnp.concatenate([bias, bias]).astype(jnp.float32),
                 (0, Np - 2 * Cout)).reshape(1, Np)

    # --- batch blocking: amortize per-step overhead, keep >=2 steps for megacore.
    if block_b is None:
        in_block = (H + 1) * (W + 2) * K * 2            # bf16 input block / image
        out_block = 2 * HW * Np * 4                     # f32 output block / image
        per_img = 2 * (in_block + out_block)            # double-buffered
        budget = 24 << 20                               # conservative, v7x (64 MiB VMEM) safe
        block_b = max(1, min(B, budget // max(per_img, 1)))
        if B >= 2:
            block_b = min(block_b, max(1, B // 2))      # >=2 grid steps -> both TCs on v7x
        while B % block_b:
            block_b -= 1
    Bt = block_b

    kernel = functools.partial(_upsample_conv_kernel, H=H, W=W, Cin=Cin)
    out = pl.pallas_call(
        kernel,
        out_shape=jax.ShapeDtypeStruct((B, 2, HW, Np), jnp.float32),
        grid_spec=pltpu.PrefetchScalarGridSpec(
            num_scalar_prefetch=0,
            grid=(B // Bt,),
            in_specs=[
                pl.BlockSpec((Bt, H + 1, W + 2, K), lambda b: (b, 0, 0, 0)),
                pl.BlockSpec((2, 6 * Cin, Np), lambda b: (0, 0, 0)),
                pl.BlockSpec((1, Np), lambda b: (0, 0)),
            ],
            out_specs=pl.BlockSpec((Bt, 2, HW, Np), lambda b: (b, 0, 0, 0)),
        ),
        compiler_params=pltpu.CompilerParams(
            dimension_semantics=("parallel",),          # megacore-shard batch on v7x
            vmem_limit_bytes=48 * 1024 * 1024,
        ),
        cost_estimate=pl.CostEstimate(
            flops=2 * B * 2 * 3 * HW * K * Np,          # 6 matmuls / image
            transcendentals=0,
            bytes_accessed=int(xrow.size * 2 + wf.size * 2 + bp.size * 4
                               + B * 2 * HW * Np * 4),
        ),
    )(xrow, wf, bp)

    # (B, 2, HW, Np) parity-packed -> NCHW (B, Cout, 2H, 2W).
    # Slice padded lanes BEFORE the transpose pass; this transpose replaces the
    # NHWC->NCHW transpose the module interface needs anyway.
    out = out[..., :2 * Cout].reshape(B, 2, H, W, 2, Cout)   # (b, py, s, t, px, co)
    out = jnp.transpose(out, (0, 5, 2, 1, 3, 4))             # (b, co, s, py, t, px)
    return out.reshape(B, Cout, 2 * H, 2 * W)


if __name__ == "__main__":
    B, C, H, W = 2, 64, 16, 16

    key = jax.random.PRNGKey(0)
    kx, kw, kb = jax.random.split(key, 3)
    x = jax.random.normal(kx, (B, C, H, W), dtype=jnp.float32)
    w = 0.05 * jax.random.normal(kw, (C, C, 3, 3), dtype=jnp.float32)
    b = 0.1 * jax.random.normal(kb, (C,), dtype=jnp.float32)

    fwd = jax.jit(upsample_forward)
    out = jax.block_until_ready(fwd(x, w, b))
    assert out.shape == (B, C, 2 * H, 2 * W), out.shape
    assert bool(jnp.all(jnp.isfinite(out)))

    # Reference: XLA nearest-x2 upsample + f32 conv (matches the PyTorch module).
    up = jnp.repeat(jnp.repeat(x, 2, axis=2), 2, axis=3)
    ref = jax.lax.conv_general_dilated(
        up, w, window_strides=(1, 1), padding=((1, 1), (1, 1)),
        dimension_numbers=("NCHW", "OIHW", "NCHW"),
        precision=jax.lax.Precision.HIGHEST,
    ) + b[None, :, None, None]
    err = float(jnp.max(jnp.abs(out - ref)))
    assert err < 5e-2, f"max abs err {err}"

    print("KERNEL_OK")
</pallas_src>

<mosaic_0001>
module attributes {stable_mosaic.version = 11 : i64} {
  func.func @_upsample_conv_kernel(%arg0: i32, %arg1: memref<1x17x18x128xbf16, #tpu.memory_space<vmem>>, %arg2: memref<2x384x128xbf16, #tpu.memory_space<vmem>>, %arg3: memref<1x128xf32, #tpu.memory_space<vmem>>, %arg4: memref<1x2x256x128xf32, #tpu.memory_space<vmem>>) attributes {dimension_semantics = [#tpu.dimension_semantics<parallel>], iteration_bounds = array<i64: 2>, scalar_prefetch = 0 : i64, scratch_operands = 0 : i64, tpu.core_type = #tpu.core_type<tc>, window_params = [{transform_indices = @transform_0, window_bounds = array<i64: 1, 17, 18, 128>}, {pipeline_mode = #tpu.pipeline_mode<synchronous>, transform_indices = @transform_1, window_bounds = array<i64: 2, 384, 128>}, {pipeline_mode = #tpu.pipeline_mode<synchronous>, transform_indices = @transform_2, window_bounds = array<i64: 1, 128>}, {transform_indices = @transform_3, window_bounds = array<i64: 1, 2, 256, 128>}]} {
    %c0 = arith.constant 0 : index
    %c0_0 = arith.constant 0 : index
    %0 = vector.load %arg3[%c0, %c0_0] : memref<1x128xf32, #tpu.memory_space<vmem>>, vector<1x128xf32>
    %c0_1 = arith.constant 0 : index
    %c0_2 = arith.constant 0 : index
    %c0_3 = arith.constant 0 : index
    %c0_4 = arith.constant 0 : index
    %1 = vector.load %arg1[%c0_1, %c0_2, %c0_3, %c0_4] : memref<1x17x18x128xbf16, #tpu.memory_space<vmem>>, vector<1x16x16x128xbf16>
    %2 = vector.shape_cast %1 : vector<1x16x16x128xbf16> to vector<256x128xbf16>
    %c0_5 = arith.constant 0 : index
    %c0_6 = arith.constant 0 : index
    %c0_7 = arith.constant 0 : index
    %3 = vector.load %arg2[%c0_5, %c0_6, %c0_7] : memref<2x384x128xbf16, #tpu.memory_space<vmem>>, vector<1x128x128xbf16>
    %4 = vector.shape_cast %3 : vector<1x128x128xbf16> to vector<128x128xbf16>
    %cst = arith.constant dense<0.000000e+00> : vector<256x128xf32>
    %5 = tpu.matmul %2, %4, %cst {dimension_numbers = #tpu.dot_dimension_numbers<[1], [0], [0], [1], [0, 0, 1, 1], [], []>} : vector<256x128xbf16>, vector<128x128xbf16>, vector<256x128xf32> -> vector<256x128xf32>
    %6 = vector.broadcast %0 : vector<1x128xf32> to vector<256x128xf32>
    %7 = arith.addf %6, %5 : vector<256x128xf32>
    %c0_8 = arith.constant 0 : index
    %c0_9 = arith.constant 0 : index
    %c1 = arith.constant 1 : index
    %c0_10 = arith.constant 0 : index
    %8 = vector.load %arg1[%c0_8, %c0_9, %c1, %c0_10] : memref<1x17x18x128xbf16, #tpu.memory_space<vmem>>, vector<1x16x16x128xbf16>
    %9 = vector.shape_cast %8 : vector<1x16x16x128xbf16> to vector<256x128xbf16>
    %c0_11 = arith.constant 0 : index
    %c128 = arith.constant 128 : index
    %c0_12 = arith.constant 0 : index
    %10 = vector.load %arg2[%c0_11, %c128, %c0_12] : memref<2x384x128xbf16, #tpu.memory_space<vmem>>, vector<1x128x128xbf16>
    %11 = vector.shape_cast %10 : vector<1x128x128xbf16> to vector<128x128xbf16>
    %cst_13 = arith.constant dense<0.000000e+00> : vector<256x128xf32>
    %12 = tpu.matmul %9, %11, %cst_13 {dimension_numbers = #tpu.dot_dimension_numbers<[1], [0], [0], [1], [0, 0, 1, 1], [], []>} : vector<256x128xbf16>, vector<128x128xbf16>, vector<256x128xf32> -> vector<256x128xf32>
    %13 = arith.addf %7, %12 : vector<256x128xf32>
    %c0_14 = arith.constant 0 : index
    %c0_15 = arith.constant 0 : index
    %c2 = arith.constant 2 : index
    %c0_16 = arith.constant 0 : index
    %14 = vector.load %arg1[%c0_14, %c0_15, %c2, %c0_16] : memref<1x17x18x128xbf16, #tpu.memory_space<vmem>>, vector<1x16x16x128xbf16>
    %15 = vector.shape_cast %14 : vector<1x16x16x128xbf16> to vector<256x128xbf16>
    %c0_17 = arith.constant 0 : index
    %c256 = arith.constant 256 : index
    %c0_18 = arith.constant 0 : index
    %16 = vector.load %arg2[%c0_17, %c256, %c0_18] : memref<2x384x128xbf16, #tpu.memory_space<vmem>>, vector<1x128x128xbf16>
    %17 = vector.shape_cast %16 : vector<1x128x128xbf16> to vector<128x128xbf16>
    %cst_19 = arith.constant dense<0.000000e+00> : vector<256x128xf32>
    %18 = tpu.matmul %15, %17, %cst_19 {dimension_numbers = #tpu.dot_dimension_numbers<[1], [0], [0], [1], [0, 0, 1, 1], [], []>} : vector<256x128xbf16>, vector<128x128xbf16>, vector<256x128xf32> -> vector<256x128xf32>
    %19 = arith.addf %13, %18 : vector<256x128xf32>
    %20 = vector.shape_cast %19 : vector<256x128xf32> to vector<1x256x128xf32>
    %c0_20 = arith.constant 0 : index
    %c0_21 = arith.constant 0 : index
    %c0_22 = arith.constant 0 : index
    %c0_23 = arith.constant 0 : index
    %21 = vector.load %arg4[%c0_20, %c0_21, %c0_22, %c0_23] : memref<1x2x256x128xf32, #tpu.memory_space<vmem>>, vector<1x1x256x128xf32>
    %22 = vector.shape_cast %21 : vector<1x1x256x128xf32> to vector<1x256x128xf32>
    %23 = vector.shape_cast %20 : vector<1x256x128xf32> to vector<1x1x256x128xf32>
    tpu.vector_store %arg4[%c0_20, %c0_21, %c0_22, %c0_23], %23 {strides = array<i32>} : memref<1x2x256x128xf32, #tpu.memory_space<vmem>>, vector<1x1x256x128xf32>,
    %c0_24 = arith.constant 0 : index
    %c1_25 = arith.constant 1 : index
    %c0_26 = arith.constant 0 : index
    %c0_27 = arith.constant 0 : index
    %24 = vector.load %arg1[%c0_24, %c1_25, %c0_26, %c0_27] : memref<1x17x18x128xbf16, #tpu.memory_space<vmem>>, vector<1x16x16x128xbf16>
    %25 = vector.shape_cast %24 : vector<1x16x16x128xbf16> to vector<256x128xbf16>
    %c1_28 = arith.constant 1 : index
    %c0_29 = arith.constant 0 : index
    %c0_30 = arith.constant 0 : index
    %26 = vector.load %arg2[%c1_28, %c0_29, %c0_30] : memref<2x384x128xbf16, #tpu.memory_space<vmem>>, vector<1x128x128xbf16>
    %27 = vector.shape_cast %26 : vector<1x128x128xbf16> to vector<128x128xbf16>
    %cst_31 = arith.constant dense<0.000000e+00> : vector<256x128xf32>
    %28 = tpu.matmul %25, %27, %cst_31 {dimension_numbers = #tpu.dot_dimension_numbers<[1], [0], [0], [1], [0, 0, 1, 1], [], []>} : vector<256x128xbf16>, vector<128x128xbf16>, vector<256x128xf32> -> vector<256x128xf32>
    %29 = vector.broadcast %0 : vector<1x128xf32> to vector<256x128xf32>
    %30 = arith.addf %29, %28 : vector<256x128xf32>
    %c0_32 = arith.constant 0 : index
    %c1_33 = arith.constant 1 : index
    %c1_34 = arith.constant 1 : index
    %c0_35 = arith.constant 0 : index
    %31 = vector.load %arg1[%c0_32, %c1_33, %c1_34, %c0_35] : memref<1x17x18x128xbf16, #tpu.memory_space<vmem>>, vector<1x16x16x128xbf16>
    %32 = vector.shape_cast %31 : vector<1x16x16x128xbf16> to vector<256x128xbf16>
    %c1_36 = arith.constant 1 : index
    %c128_37 = arith.constant 128 : index
    %c0_38 = arith.constant 0 : index
    %33 = vector.load %arg2[%c1_36, %c128_37, %c0_38] : memref<2x384x128xbf16, #tpu.memory_space<vmem>>, vector<1x128x128xbf16>
    %34 = vector.shape_cast %33 : vector<1x128x128xbf16> to vector<128x128xbf16>
    %cst_39 = arith.constant dense<0.000000e+00> : vector<256x128xf32>
    %35 = tpu.matmul %32, %34, %cst_39 {dimension_numbers = #tpu.dot_dimension_numbers<[1], [0], [0], [1], [0, 0, 1, 1], [], []>} : vector<256x128xbf16>, vector<128x128xbf16>, vector<256x128xf32> -> vector<256x128xf32>
    %36 = arith.addf %30, %35 : vector<256x128xf32>
    %c0_40 = arith.constant 0 : index
    %c1_41 = arith.constant 1 : index
    %c2_42 = arith.constant 2 : index
    %c0_43 = arith.constant 0 : index
    %37 = vector.load %arg1[%c0_40, %c1_41, %c2_42, %c0_43] : memref<1x17x18x128xbf16, #tpu.memory_space<vmem>>, vector<1x16x16x128xbf16>
    %38 = vector.shape_cast %37 : vector<1x16x16x128xbf16> to vector<256x128xbf16>
    %c1_44 = arith.constant 1 : index
    %c256_45 = arith.constant 256 : index
    %c0_46 = arith.constant 0 : index
    %39 = vector.load %arg2[%c1_44, %c256_45, %c0_46] : memref<2x384x128xbf16, #tpu.memory_space<vmem>>, vector<1x128x128xbf16>
    %40 = vector.shape_cast %39 : vector<1x128x128xbf16> to vector<128x128xbf16>
    %cst_47 = arith.constant dense<0.000000e+00> : vector<256x128xf32>
    %41 = tpu.matmul %38, %40, %cst_47 {dimension_numbers = #tpu.dot_dimension_numbers<[1], [0], [0], [1], [0, 0, 1, 1], [], []>} : vector<256x128xbf16>, vector<128x128xbf16>, vector<256x128xf32> -> vector<256x128xf32>
    %42 = arith.addf %36, %41 : vector<256x128xf32>
    %43 = vector.shape_cast %42 : vector<256x128xf32> to vector<1x256x128xf32>
    %c0_48 = arith.constant 0 : index
    %c1_49 = arith.constant 1 : index
    %c0_50 = arith.constant 0 : index
    %c0_51 = arith.constant 0 : index
    %44 = vector.load %arg4[%c0_48, %c1_49, %c0_50, %c0_51] : memref<1x2x256x128xf32, #tpu.memory_space<vmem>>, vector<1x1x256x128xf32>
    %45 = vector.shape_cast %44 : vector<1x1x256x128xf32> to vector<1x256x128xf32>
    %46 = vector.shape_cast %43 : vector<1x256x128xf32> to vector<1x1x256x128xf32>
    tpu.vector_store %arg4[%c0_48, %c1_49, %c0_50, %c0_51], %46 {strides = array<i32>} : memref<1x2x256x128xf32, #tpu.memory_space<vmem>>, vector<1x1x256x128xf32>,
    return
  }
  func.func @transform_0(%arg0: i32) -> (i32, i32, i32, i32) {
    %c0_i32 = arith.constant 0 : i32
    %c0_i32_0 = arith.constant 0 : i32
    %c0_i32_1 = arith.constant 0 : i32
    %c0_i32_2 = arith.constant 0 : i32
    return %arg0, %c0_i32, %c0_i32_0, %c0_i32_1 : i32, i32, i32, i32
  }
  func.func @transform_1(%arg0: i32) -> (i32, i32, i32) {
    %c0_i32 = arith.constant 0 : i32
    %c0_i32_0 = arith.constant 0 : i32
    %c0_i32_1 = arith.constant 0 : i32
    %c0_i32_2 = arith.constant 0 : i32
    return %c0_i32, %c0_i32_0, %c0_i32_1 : i32, i32, i32
  }
  func.func @transform_2(%arg0: i32) -> (i32, i32) {
    %c0_i32 = arith.constant 0 : i32
    %c0_i32_0 = arith.constant 0 : i32
    %c0_i32_1 = arith.constant 0 : i32
    return %c0_i32, %c0_i32_0 : i32, i32
  }
  func.func @transform_3(%arg0: i32) -> (i32, i32, i32, i32) {
    %c0_i32 = arith.constant 0 : i32
    %c0_i32_0 = arith.constant 0 : i32
    %c0_i32_1 = arith.constant 0 : i32
    %c0_i32_2 = arith.constant 0 : i32
    return %arg0, %c0_i32, %c0_i32_0, %c0_i32_1 : i32, i32, i32, i32
  }
}

</mosaic_0001>

<llo_original>
// kernel: upsample_forward.1
$region0: #{upsample_forward.1}
  #allocation0 [shape = 'u32[]', space=smem, size = 0x4, offset = 0x4, fixed_abs, tag = 'smem constant byte address 0x4 - core index']
  #allocation1 [shape = 'u32[144,128]{1,0:T(1,128)}', space=vmem, size = 0x12000, scoped, tag = 'internal scratch']
  %s0 = inlined_call_operand.vmem [shape: bf16[2,17,18,128], index: 0, kind: input, shape index: {}]
  %s1 = inlined_call_operand.vmem [shape: bf16[2,384,128], index: 1, kind: input, shape index: {}]
  %s2 = inlined_call_operand.vmem [shape: f32[1,128], index: 2, kind: input, shape index: {}]
  %s3 = inlined_call_operand.vmem [shape: f32[2,2,256,128], index: 3, kind: output, shape index: {}]
  %s4 = sld [smem:[#allocation0]]
  $region45: #{upsample_forward.1} parent=0
    _
  %s6 = ssub.s32 1, %s4
  %s7 = scalar_select 0, %s6, %s4
  loop: start=0, step=1, limit=4
  $region2: #{upsample_forward.1} parent=0 // loop_pre_header
    _
  $region3: #{upsample_forward.1} parent=0 // loop_header
    %s9 = sphi 0, %s13
    %p10 = scmp.ge.s32.totalorder %s9, 4
    %s19 = sphi 0, %s21
    %s22 = sphi 0, %s19
    %s23 = sphi 0, %s22
    %s39 = sphi 0, %s23
    %s43 = sphi 0, %s43
    %s45 = sphi 0, %s43
    %s46 = sphi 0, %s45
    %s60 = sphi 0, %s46
    %s64 = sphi 0, %s64
    %s66 = sphi 0, %s64
    %s67 = sphi 0, %s66
    %s81 = sphi 0, %s67
    %s87 = sphi 0, %s89
    %s90 = sphi 0, %s87
    %s91 = sphi 0, %s90
    %s107 = sphi 0, %s91
  $region4: #{upsample_forward.1} parent=0 // loop_header_branch
    %12 = sbr.rel (%p10) target = $region8
  $region5: #{upsample_forward.1} parent=0 // loop_body
    %s14 = ssub.s32 %s9, 1
    %s15 = ssub.s32 %s9, 2
    %s16 = sadd.s32 %s9, 1
    %s17 = ssub.s32 %s9, %s16
    %p18 = scmp.eq.s32.totalorder %s17, 0
    %s20 = sadd.s32 %s19, 1
    %s21 = scalar_select %p18, %s19, %s20
    %p24 = pneg %p18
    %p25 = scmp.eq.s32.totalorder %s9, 1
    %p26 = por %p24, %p25
    %p27 = scmp.ne.s32.totalorder %s19, %s22
    %p28 = scmp.eq.s32.totalorder %s9, 0
    %p29 = por %p27, %p28
    %p30 = scmp.ne.s32.totalorder %s19, %s22
    %p31 = scmp.eq.s32.totalorder %s14, 1
    %p32 = por %p30, %p31
    %p33 = scmp.ne.s32.totalorder %s22, %s23
    %p34 = scmp.eq.s32.totalorder %s14, 0
    %p35 = por %p33, %p34
    %p36 = scmp.ne.s32.totalorder %s22, %s23
    %p37 = scmp.eq.s32.totalorder %s15, 1
    %p38 = por %p36, %p37
    %p40 = scmp.ne.s32.totalorder %s23, %s39
    %p41 = scmp.eq.s32.totalorder %s15, 0
    %p42 = por %p40, %p41
    %s44 = sadd.s32 %s43, 1
    %p47 = scmp.eq.s32.totalorder %s9, 1
    %p48 = scmp.ne.s32.totalorder %s43, %s45
    %p49 = scmp.eq.s32.totalorder %s9, 0
    %p50 = por %p48, %p49
    %p51 = scmp.ne.s32.totalorder %s43, %s45
    %p52 = scmp.eq.s32.totalorder %s14, 1
    %p53 = por %p51, %p52
    %p54 = scmp.ne.s32.totalorder %s45, %s46
    %p55 = scmp.eq.s32.totalorder %s14, 0
    %p56 = por %p54, %p55
    %p57 = scmp.ne.s32.totalorder %s45, %s46
    %p58 = scmp.eq.s32.totalorder %s15, 1
    %p59 = por %p57, %p58
    %p61 = scmp.ne.s32.totalorder %s46, %s60
    %p62 = scmp.eq.s32.totalorder %s15, 0
    %p63 = por %p61, %p62
    %s65 = sadd.s32 %s64, 1
    %p68 = scmp.eq.s32.totalorder %s9, 1
    %p69 = scmp.ne.s32.totalorder %s64, %s66
    %p70 = scmp.eq.s32.totalorder %s9, 0
    %p71 = por %p69, %p70
    %p72 = scmp.ne.s32.totalorder %s64, %s66
    %p73 = scmp.eq.s32.totalorder %s14, 1
    %p74 = por %p72, %p73
    %p75 = scmp.ne.s32.totalorder %s66, %s67
    %p76 = scmp.eq.s32.totalorder %s14, 0
    %p77 = por %p75, %p76
    %p78 = scmp.ne.s32.totalorder %s66, %s67
    %p79 = scmp.eq.s32.totalorder %s15, 1
    %p80 = por %p78, %p79
    %p82 = scmp.ne.s32.totalorder %s67, %s81
    %p83 = scmp.eq.s32.totalorder %s15, 0
    %p84 = por %p82, %p83
    %s85 = ssub.s32 %s9, %s16
    %p86 = scmp.eq.s32.totalorder %s85, 0
    %s88 = sadd.s32 %s87, 1
    %s89 = scalar_select %p86, %s87, %s88
    %p92 = pneg %p86
    %p93 = scmp.eq.s32.totalorder %s9, 1
    %p94 = por %p92, %p93
    %p95 = scmp.ne.s32.totalorder %s87, %s90
    %p96 = scmp.eq.s32.totalorder %s9, 0
    %p97 = por %p95, %p96
    %p98 = scmp.ne.s32.totalorder %s87, %s90
    %p99 = scmp.eq.s32.totalorder %s14, 1
    %p100 = por %p98, %p99
    %p101 = scmp.ne.s32.totalorder %s90, %s91
    %p102 = scmp.eq.s32.totalorder %s14, 0
    %p103 = por %p101, %p102
    %p104 = scmp.ne.s32.totalorder %s90, %s91
    %p105 = scmp.eq.s32.totalorder %s15, 1
    %p106 = por %p104, %p105
    %p108 = scmp.ne.s32.totalorder %s91, %s107
    %p109 = scmp.eq.s32.totalorder %s15, 0
    %p110 = por %p108, %p109
    %p111 = scmp.le.s32.totalorder 1, %s9
    %p112 = scmp.lt.s32.totalorder %s9, 3
    %p113 = pnand %p111, %p112
    %p114 = pneg %p113
    // Predicated region
    $region9: #{upsample_forward.1} parent=5 // pred_check
      _
    $region10: #{upsample_forward.1} parent=5 // pred_check_branch
      %116 = sbr.rel (%p113) target = $region12
    $region11: #{upsample_forward.1} parent=5 // pred_region
      %s117 = ssub.s32 %s9, 1
      // Predicated region
      $region13: #{upsample_forward.1} parent=11 // pred_check
        %p118 = pneg %p56
      $region14: #{upsample_forward.1} parent=11 // pred_check_branch
        %120 = sbr.rel (%p118) target = $region16
      $region15: #{upsample_forward.1} parent=11 // pred_region
        _
      $region16: #{upsample_forward.1} parent=11 // pred_fallthru
        _
      // Predicated region
      $region17: #{upsample_forward.1} parent=11 // pred_check
        %p121 = pneg %p77
      $region18: #{upsample_forward.1} parent=11 // pred_check_branch
        %123 = sbr.rel (%p121) target = $region20
      $region19: #{upsample_forward.1} parent=11 // pred_region
        _
      $region20: #{upsample_forward.1} parent=11 // pred_fallthru
        _
    $region12: #{upsample_forward.1} parent=5 // pred_fallthru
      _
    %p124 = scmp.lt.s32.totalorder %s9, 2
    // Predicated region
    $region21: #{upsample_forward.1} parent=5 // pred_check
      %p125 = pneg %p124
    $region22: #{upsample_forward.1} parent=5 // pred_check_branch
      %127 = sbr.rel (%p125) target = $region24
    $region23: #{upsample_forward.1} parent=5 // pred_region
      // Predicated region
      $region25: #{upsample_forward.1} parent=23 // pred_check
        %p128 = pneg %p29
      $region26: #{upsample_forward.1} parent=23 // pred_check_branch
        %130 = sbr.rel (%p128) target = $region28
      $region27: #{upsample_forward.1} parent=23 // pred_region
        %p131 = scmp.lt.s32.totalorder %s9, 1
        %s132 = scalar_select %p131, %s9, 1
        %s133 = smul.addr %s132, 51
        %s134 = smul.addr %s133, 4
        %s135 = scalar_lea.vmem %s0, %s134
      $region28: #{upsample_forward.1} parent=23 // pred_fallthru
        _
    $region24: #{upsample_forward.1} parent=5 // pred_fallthru
      _
    %p136 = scmp.le.s32.totalorder 1, %s9
    %p137 = scmp.lt.s32.totalorder %s9, 3
    %p138 = pnand %p136, %p137
    %p139 = pneg %p138
    // Predicated region
    $region29: #{upsample_forward.1} parent=5 // pred_check
      _
    $region30: #{upsample_forward.1} parent=5 // pred_check_branch
      %141 = sbr.rel (%p138) target = $region32
    $region31: #{upsample_forward.1} parent=5 // pred_region
      %s142 = ssub.s32 %s9, 1
      %p143 = scmp.lt.s32.totalorder %s14, 1
      %s144 = scalar_select %p143, %s14, 1
      %s145 = smul.addr %s144, 51
      %s146 = smul.addr %s145, 4
      %s147 = scalar_lea.vmem %s0, %s146
      %p148 = pneg %p35
      %p149 = pneg %p32
      %p150 = pneg %p56
      %p151 = pneg %p53
      %p152 = pneg %p77
      %p153 = pneg %p74
      %p154 = pneg %p103
      %p155 = pneg %p100
      %p156 = scmp.lt.s32.totalorder %s14, 1
      %s157 = scalar_select %p156, %s14, 1
      %s158 = smul.addr %s157, 64
      %s159 = smul.addr %s158, 8
      %s160 = scalar_lea.vmem %s3, %s159
      %p161 = scmp.lt.s32.totalorder %s14, 1
      %s162 = scalar_select %p161, %s14, 1
      %s163 = smul.addr %s162, 51
      %s164 = smul.addr %s163, 4
      %s165 = scalar_lea.vmem %s0, %s164
      %p166 = scmp.lt.s32.totalorder %s14, 1
      %s167 = scalar_select %p166, %s14, 1
      %s168 = smul.addr %s167, 64
      %s169 = smul.addr %s168, 8
      %s170 = scalar_lea.vmem %s3, %s169
      %v172 = vld [vmem:[%s2] sm:$0x1]
      %v173 = vld [vmem:[%s165] sm:$0xf]
      %v174 = vld [vmem:[%s165 + $0x4] sm:$0xf]
      %v175 = vld [vmem:[%s165 + $0xc] sm:$0xf]
      %v176 = vld [vmem:[%s165 + $0x10] sm:$0xf]
      %v177 = vld [vmem:[%s165 + $0x18] sm:$0xf]
      %v178 = vld [vmem:[%s165 + $0x1c] sm:$0xf]
      %v179 = vld [vmem:[%s165 + $0x24] sm:$0xf]
      %v180 = vld [vmem:[%s165 + $0x28] sm:$0xf]
      %v181 = vld [vmem:[%s165 + $0x30] sm:$0xf]
      %v182 = vld [vmem:[%s165 + $0x34] sm:$0xf]
      %v183 = vld [vmem:[%s165 + $0x3c] sm:$0xf]
      %v184 = vld [vmem:[%s165 + $0x40] sm:$0xf]
      %v185 = vld [vmem:[%s165 + $0x48] sm:$0xf]
      %v186 = vld [vmem:[%s165 + $0x4c] sm:$0xf]
      %v187 = vld [vmem:[%s165 + $0x54] sm:$0xf]
      %v188 = vld [vmem:[%s165 + $0x58] sm:$0xf]
      %v189 = vld [vmem:[%s165 + $0x60] sm:$0xf]
      %v190 = vld [vmem:[%s165 + $0x64] sm:$0xf]
      %v191 = vld [vmem:[%s165 + $0x6c] sm:$0xf]
      %v192 = vld [vmem:[%s165 + $0x70] sm:$0xf]
      %v193 = vld [vmem:[%s165 + $0x78] sm:$0xf]
      %v194 = vld [vmem:[%s165 + $0x7c] sm:$0xf]
      %v195 = vld [vmem:[%s165 + $0x84] sm:$0xf]
      %v196 = vld [vmem:[%s165 + $0x88] sm:$0xf]
      %v197 = vld [vmem:[%s165 + $0x90] sm:$0xf]
      %v198 = vld [vmem:[%s165 + $0x94] sm:$0xf]
      %v199 = vld [vmem:[%s165 + $0x9c] sm:$0xf]
      %v200 = vld [vmem:[%s165 + $0xa0] sm:$0xf]
      %v201 = vld [vmem:[%s165 + $0xa8] sm:$0xf]
      %v202 = vld [vmem:[%s165 + $0xac] sm:$0xf]
      %v203 = vld [vmem:[%s165 + $0xb4] sm:$0xf]
      %v204 = vld [vmem:[%s165 + $0xb8] sm:$0xf]
      %v205 = vld [vmem:[%s1] sm:$0xf]
      %v206 = vld [vmem:[%s1 + $0x4] sm:$0xf]
      %v207 = vld [vmem:[%s1 + $0x8] sm:$0xf]
      %v208 = vld [vmem:[%s1 + $0xc] sm:$0xf]
      %v209 = vld [vmem:[%s1 + $0x10] sm:$0xf]
      %v210 = vld [vmem:[%s1 + $0x14] sm:$0xf]
      %v211 = vld [vmem:[%s1 + $0x18] sm:$0xf]
      %v212 = vld [vmem:[%s1 + $0x1c] sm:$0xf]
      %v213 = vld [vmem:[%s1 + $0x20] sm:$0xf]
      %v214 = vld [vmem:[%s1 + $0x24] sm:$0xf]
      %v215 = vld [vmem:[%s1 + $0x28] sm:$0xf]
      %v216 = vld [vmem:[%s1 + $0x2c] sm:$0xf]
      %v217 = vld [vmem:[%s1 + $0x30] sm:$0xf]
      %v218 = vld [vmem:[%s1 + $0x34] sm:$0xf]
      %v219 = vld [vmem:[%s1 + $0x38] sm:$0xf]
      %v220 = vld [vmem:[%s1 + $0x3c] sm:$0xf]
      %v253 = vunpack.c.l.b16 %v173
      %v254 = vunpack.c.l.b16 %v174
      %v255 = vunpack.c.l.b16 %v175
      %v256 = vunpack.c.l.b16 %v176
      %v257 = vunpack.c.l.b16 %v177
      %v258 = vunpack.c.l.b16 %v178
      %v259 = vunpack.c.l.b16 %v179
      %v260 = vunpack.c.l.b16 %v180
      %v261 = vunpack.c.l.b16 %v181
      %v262 = vunpack.c.l.b16 %v182
      %v263 = vunpack.c.l.b16 %v183
      %v264 = vunpack.c.l.b16 %v184
      %v265 = vunpack.c.l.b16 %v185
      %v266 = vunpack.c.l.b16 %v186
      %v267 = vunpack.c.l.b16 %v187
      %v268 = vunpack.c.l.b16 %v188
      %v269 = vunpack.c.l.b16 %v189
      %v270 = vunpack.c.l.b16 %v190
      %v271 = vunpack.c.l.b16 %v191
      %v272 = vunpack.c.l.b16 %v192
      %v273 = vunpack.c.l.b16 %v193
      %v274 = vunpack.c.l.b16 %v194
      %v275 = vunpack.c.l.b16 %v195
      %v276 = vunpack.c.l.b16 %v196
      %v277 = vunpack.c.l.b16 %v197
      %v278 = vunpack.c.l.b16 %v198
      %v279 = vunpack.c.l.b16 %v199
      %v280 = vunpack.c.l.b16 %v200
      %v281 = vunpack.c.l.b16 %v201
      %v282 = vunpack.c.l.b16 %v202
      %v283 = vunpack.c.l.b16 %v203
      %v284 = vunpack.c.l.b16 %v204
      %v285 = vpack.c.b16 %v254, %v253
      %v286 = vpack.c.b16 %v256, %v255
      %v287 = vpack.c.b16 %v258, %v257
      %v288 = vpack.c.b16 %v260, %v259
      %v289 = vpack.c.b16 %v262, %v261
      %v290 = vpack.c.b16 %v264, %v263
      %v291 = vpack.c.b16 %v266, %v265
      %v292 = vpack.c.b16 %v268, %v267
      %v293 = vpack.c.b16 %v270, %v269
      %v294 = vpack.c.b16 %v272, %v271
      %v295 = vpack.c.b16 %v274, %v273
      %v296 = vpack.c.b16 %v276, %v275
      %v297 = vpack.c.b16 %v278, %v277
      %v298 = vpack.c.b16 %v280, %v279
      %v299 = vpack.c.b16 %v282, %v281
      %v300 = vpack.c.b16 %v284, %v283
      %v333 = vunpack.c.l.b16 %v205
      %v334 = vunpack.c.l.b16 %v206
      %v335 = vunpack.c.l.b16 %v207
      %v336 = vunpack.c.l.b16 %v208
      %v337 = vunpack.c.l.b16 %v209
      %v338 = vunpack.c.l.b16 %v210
      %v339 = vunpack.c.l.b16 %v211
      %v340 = vunpack.c.l.b16 %v212
      %v341 = vunpack.c.l.b16 %v213
      %v342 = vunpack.c.l.b16 %v214
      %v343 = vunpack.c.l.b16 %v215
      %v344 = vunpack.c.l.b16 %v216
      %v345 = vunpack.c.l.b16 %v217
      %v346 = vunpack.c.l.b16 %v218
      %v347 = vunpack.c.l.b16 %v219
      %v348 = vunpack.c.l.b16 %v220
      %v349 = vpack.c.b16 %v334, %v333
      %v350 = vpack.c.b16 %v336, %v335
      %v351 = vpack.c.b16 %v338, %v337
      %v352 = vpack.c.b16 %v340, %v339
      %v353 = vpack.c.b16 %v342, %v341
      %v354 = vpack.c.b16 %v344, %v343
      %v355 = vpack.c.b16 %v346, %v345
      %v356 = vpack.c.b16 %v348, %v347
      %365 = vmatprep.subr.bf16.mxu0 0
      %366 = vmatpush1.bf16.msra.mxu0 %v349
      %367 = vmatprep.subr.bf16.mxu0 0
      %368 = vmatpush1.bf16.msra.mxu0 %v350
      %369 = vmatprep.subr.bf16.mxu0 0
      %370 = vmatpush1.bf16.msra.mxu0 %v351
      %371 = vmatprep.subr.bf16.mxu0 0
      %372 = vmatpush1.bf16.msra.mxu0 %v352
      %373 = vmatprep.subr.bf16.mxu0 0
      %374 = vmatpush1.bf16.msra.mxu0 %v353
      %375 = vmatprep.subr.bf16.mxu0 0
      %376 = vmatpush1.bf16.msra.mxu0 %v354
      %377 = vmatprep.subr.bf16.mxu0 0
      %378 = vmatpush1.bf16.msra.mxu0 %v355
      %379 = vmatprep.subr.bf16.mxu0 0
      %380 = vmatpush1.bf16.msra.mxu0 %v356
      %381 = vmatprep.subr.bf16.mxu0 0
      %382 = vmatpush1.bf16.msra.mxu0 0
      %383 = vmatprep.subr.bf16.mxu0 0
      %384 = vmatpush1.bf16.msra.mxu0 0
      %385 = vmatprep.subr.bf16.mxu0 0
      %386 = vmatpush1.bf16.msra.mxu0 0
      %387 = vmatprep.subr.bf16.mxu0 0
      %388 = vmatpush1.bf16.msra.mxu0 0
      %389 = vmatprep.subr.bf16.mxu0 0
      %390 = vmatpush1.bf16.msra.mxu0 0
      %391 = vmatprep.subr.bf16.mxu0 0
      %392 = vmatpush1.bf16.msra.mxu0 0
      %393 = vmatprep.subr.bf16.mxu0 0
      %394 = vmatpush1.bf16.msra.mxu0 0
      %395 = vmatprep.subr.bf16.mxu0 0
      %396 = vmatpush1.bf16.msra.mxu0 0
      %397 = vmatprep.mubr.bf16.mxu0 0
      %398 = vmatmul.mubr.bf16.gmra.mrb[0].mxu0 %v285
      %v399 = vpop.f32.mrb[0].mxu0
      %v400 = vadd.f32 0.0, %v399
      %v401 = vpop.f32.mrb[0].mxu0
      %v402 = vpop.f32.mrb[0].mxu0
      %v403 = vadd.f32 0.0, %v402
      %v404 = vpop.f32.mrb[0].mxu0
      %405 = vmatprep.mubr.bf16.mxu0 0
      %406 = vmatmul.mubr.bf16.gmra.mrb[0].mxu0 %v286
      %v407 = vpop.f32.mrb[0].mxu0
      %v408 = vadd.f32 0.0, %v407
      %v409 = vpop.f32.mrb[0].mxu0
      %v410 = vpop.f32.mrb[0].mxu0
      %v411 = vadd.f32 0.0, %v410
      %v412 = vpop.f32.mrb[0].mxu0
      %413 = vmatprep.mubr.bf16.mxu0 0
      %414 = vmatmul.mubr.bf16.gmra.mrb[0].mxu0 %v287
      %v415 = vpop.f32.mrb[0].mxu0
      %v416 = vadd.f32 0.0, %v415
      %v417 = vpop.f32.mrb[0].mxu0
      %v418 = vpop.f32.mrb[0].mxu0
      %v419 = vadd.f32 0.0, %v418
      %v420 = vpop.f32.mrb[0].mxu0
      %421 = vmatprep.mubr.bf16.mxu0 0
      %422 = vmatmul.mubr.bf16.gmra.mrb[0].mxu0 %v288
      %v423 = vpop.f32.mrb[0].mxu0
      %v424 = vadd.f32 0.0, %v423
      %v425 = vpop.f32.mrb[0].mxu0
      %v426 = vpop.f32.mrb[0].mxu0
      %v427 = vadd.f32 0.0, %v426
      %v428 = vpop.f32.mrb[0].mxu0
      %429 = vmatprep.mubr.bf16.mxu0 0
      %430 = vmatmul.mubr.bf16.gmra.mrb[0].mxu0 %v289
      %v431 = vpop.f32.mrb[0].mxu0
      %v432 = vadd.f32 0.0, %v431
      %v433 = vpop.f32.mrb[0].mxu0
      %v434 = vpop.f32.mrb[0].mxu0
      %v435 = vadd.f32 0.0, %v434
      %v436 = vpop.f32.mrb[0].mxu0
      %437 = vmatprep.mubr.bf16.mxu0 0
      %438 = vmatmul.mubr.bf16.gmra.mrb[0].mxu0 %v290
      %v439 = vpop.f32.mrb[0].mxu0
      %v440 = vadd.f32 0.0, %v439
      %v441 = vpop.f32.mrb[0].mxu0
      %v442 = vpop.f32.mrb[0].mxu0
      %v443 = vadd.f32 0.0, %v442
      %v444 = vpop.f32.mrb[0].mxu0
      %445 = vmatprep.mubr.bf16.mxu0 0
      %446 = vmatmul.mubr.bf16.gmra.mrb[0].mxu0 %v291
      %v447 = vpop.f32.mrb[0].mxu0
      %v448 = vadd.f32 0.0, %v447
      %v449 = vpop.f32.mrb[0].mxu0
      %v450 = vpop.f32.mrb[0].mxu0
      %v451 = vadd.f32 0.0, %v450
      %v452 = vpop.f32.mrb[0].mxu0
      %453 = vmatprep.mubr.bf16.mxu0 0
      %454 = vmatmul.mubr.bf16.gmra.mrb[0].mxu0 %v292
      %v455 = vpop.f32.mrb[0].mxu0
      %v456 = vadd.f32 0.0, %v455
      %v457 = vpop.f32.mrb[0].mxu0
      %v458 = vpop.f32.mrb[0].mxu0
      %v459 = vadd.f32 0.0, %v458
      %v460 = vpop.f32.mrb[0].mxu0
      %461 = vmatprep.mubr.bf16.mxu0 0
      %462 = vmatmul.mubr.bf16.gmra.mrb[0].mxu0 %v293
      %v463 = vpop.f32.mrb[0].mxu0
      %v464 = vadd.f32 0.0, %v463
      %v465 = vpop.f32.mrb[0].mxu0
      %v466 = vpop.f32.mrb[0].mxu0
      %v467 = vadd.f32 0.0, %v466
      %v468 = vpop.f32.mrb[0].mxu0
      %469 = vmatprep.mubr.bf16.mxu0 0
      %470 = vmatmul.mubr.bf16.gmra.mrb[0].mxu0 %v294
      %v471 = vpop.f32.mrb[0].mxu0
      %v472 = vadd.f32 0.0, %v471
      %v473 = vpop.f32.mrb[0].mxu0
      %v474 = vpop.f32.mrb[0].mxu0
      %v475 = vadd.f32 0.0, %v474
      %v476 = vpop.f32.mrb[0].mxu0
      %477 = vmatprep.mubr.bf16.mxu0 0
      %478 = vmatmul.mubr.bf16.gmra.mrb[0].mxu0 %v295
      %v479 = vpop.f32.mrb[0].mxu0
      %v480 = vadd.f32 0.0, %v479
      %v481 = vpop.f32.mrb[0].mxu0
      %v482 = vpop.f32.mrb[0].mxu0
      %v483 = vadd.f32 0.0, %v482
      %v484 = vpop.f32.mrb[0].mxu0
      %485 = vmatprep.mubr.bf16.mxu0 0
      %486 = vmatmul.mubr.bf16.gmra.mrb[0].mxu0 %v296
      %v487 = vpop.f32.mrb[0].mxu0
      %v488 = vadd.f32 0.0, %v487
      %v489 = vpop.f32.mrb[0].mxu0
      %v490 = vpop.f32.mrb[0].mxu0
      %v491 = vadd.f32 0.0, %v490
      %v492 = vpop.f32.mrb[0].mxu0
      %493 = vmatprep.mubr.bf16.mxu0 0
      %494 = vmatmul.mubr.bf16.gmra.mrb[0].mxu0 %v297
      %v495 = vpop.f32.mrb[0].mxu0
      %v496 = vadd.f32 0.0, %v495
      %v497 = vpop.f32.mrb[0].mxu0
      %v498 = vpop.f32.mrb[0].mxu0
      %v499 = vadd.f32 0.0, %v498
      %v500 = vpop.f32.mrb[0].mxu0
      %501 = vmatprep.mubr.bf16.mxu0 0
      %502 = vmatmul.mubr.bf16.gmra.mrb[0].mxu0 %v298
      %v503 = vpop.f32.mrb[0].mxu0
      %v504 = vadd.f32 0.0, %v503
      %v505 = vpop.f32.mrb[0].mxu0
      %v506 = vpop.f32.mrb[0].mxu0
      %v507 = vadd.f32 0.0, %v506
      %v508 = vpop.f32.mrb[0].mxu0
      %509 = vmatprep.mubr.bf16.mxu0 0
      %510 = vmatmul.mubr.bf16.gmra.mrb[0].mxu0 %v299
      %v511 = vpop.f32.mrb[0].mxu0
      %v512 = vadd.f32 0.0, %v511
      %v513 = vpop.f32.mrb[0].mxu0
      %v514 = vpop.f32.mrb[0].mxu0
      %v515 = vadd.f32 0.0, %v514
      %v516 = vpop.f32.mrb[0].mxu0
      %517 = vmatprep.mubr.bf16.mxu0 0
      %518 = vmatmul.mubr.bf16.gmra.mrb[0].mxu0 %v300
      %v519 = vpop.f32.mrb[0].mxu0
      %v520 = vadd.f32 0.0, %v519
      %v521 = vpop.f32.mrb[0].mxu0
      %v522 = vpop.f32.mrb[0].mxu0
      %v523 = vadd.f32 0.0, %v522
      %v524 = vpop.f32.mrb[0].mxu0
      %525 = vdwg.mxu0
      %v527 = vlaneseq
      %v528 = vshrl.u32 %v527, 7
      %v529 = vsub.s32 0, %v528
      %v530 = vrot.slane %v172, %v529
      %v532 = vadd.f32 %v530, %v400
      %v533 = vadd.f32 %v530, %v403
      %v534 = vadd.f32 %v530, %v408
      %v535 = vadd.f32 %v530, %v411
      %v536 = vadd.f32 %v530, %v416
      %v537 = vadd.f32 %v530, %v419
      %v538 = vadd.f32 %v530, %v424
      %v539 = vadd.f32 %v530, %v427
      %v540 = vadd.f32 %v530, %v432
      %v541 = vadd.f32 %v530, %v435
      %v542 = vadd.f32 %v530, %v440
      %v543 = vadd.f32 %v530, %v443
      %v544 = vadd.f32 %v530, %v448
      %v545 = vadd.f32 %v530, %v451
      %v546 = vadd.f32 %v530, %v456
      %v547 = vadd.f32 %v530, %v459
      %v548 = vadd.f32 %v530, %v464
      %v549 = vadd.f32 %v530, %v467
      %v550 = vadd.f32 %v530, %v472
      %v551 = vadd.f32 %v530, %v475
      %v552 = vadd.f32 %v530, %v480
      %v553 = vadd.f32 %v530, %v483
      %v554 = vadd.f32 %v530, %v488
      %v555 = vadd.f32 %v530, %v491
      %v556 = vadd.f32 %v530, %v496
      %v557 = vadd.f32 %v530, %v499
      %v558 = vadd.f32 %v530, %v504
      %v559 = vadd.f32 %v530, %v507
      %v560 = vadd.f32 %v530, %v512
      %v561 = vadd.f32 %v530, %v515
      %v562 = vadd.f32 %v530, %v520
      %v563 = vadd.f32 %v530, %v523
      %v564 = vld [vmem:[%s165] sm:$0xf]
      %v565 = vld [vmem:[%s165 + $0x4] sm:$0xf]
      %v566 = vld [vmem:[%s165 + $0x8] sm:$0x1]
      %v567 = vld [vmem:[%s165 + $0xc] sm:$0xf]
      %v568 = vld [vmem:[%s165 + $0x10] sm:$0xf]
      %v569 = vld [vmem:[%s165 + $0x14] sm:$0x1]
      %v570 = vld [vmem:[%s165 + $0x18] sm:$0xf]
      %v571 = vld [vmem:[%s165 + $0x1c] sm:$0xf]
      %v572 = vld [vmem:[%s165 + $0x20] sm:$0x1]
      %v573 = vld [vmem:[%s165 + $0x24] sm:$0xf]
      %v574 = vld [vmem:[%s165 + $0x28] sm:$0xf]
      %v575 = vld [vmem:[%s165 + $0x2c] sm:$0x1]
      %v576 = vld [vmem:[%s165 + $0x30] sm:$0xf]
      %v577 = vld [vmem:[%s165 + $0x34] sm:$0xf]
      %v578 = vld [vmem:[%s165 + $0x38] sm:$0x1]
      %v579 = vld [vmem:[%s165 + $0x3c] sm:$0xf]
      %v580 = vld [vmem:[%s165 + $0x40] sm:$0xf]
      %v581 = vld [vmem:[%s165 + $0x44] sm:$0x1]
      %v582 = vld [vmem:[%s165 + $0x48] sm:$0xf]
      %v583 = vld [vmem:[%s165 + $0x4c] sm:$0xf]
      %v584 = vld [vmem:[%s165 + $0x50] sm:$0x1]
      %v585 = vld [vmem:[%s165 + $0x54] sm:$0xf]
      %v586 = vld [vmem:[%s165 + $0x58] sm:$0xf]
      %v587 = vld [vmem:[%s165 + $0x5c] sm:$0x1]
      %v588 = vld [vmem:[%s165 + $0x60] sm:$0xf]
      %v589 = vld [vmem:[%s165 + $0x64] sm:$0xf]
      %v590 = vld [vmem:[%s165 + $0x68] sm:$0x1]
      %v591 = vld [vmem:[%s165 + $0x6c] sm:$0xf]
      %v592 = vld [vmem:[%s165 + $0x70] sm:$0xf]
      %v593 = vld [vmem:[%s165 + $0x74] sm:$0x1]
      %v594 = vld [vmem:[%s165 + $0x78] sm:$0xf]
      %v595 = vld [vmem:[%s165 + $0x7c] sm:$0xf]
      %v596 = vld [vmem:[%s165 + $0x80] sm:$0x1]
      %v597 = vld [vmem:[%s165 + $0x84] sm:$0xf]
      %v598 = vld [vmem:[%s165 + $0x88] sm:$0xf]
      %v599 = vld [vmem:[%s165 + $0x8c] sm:$0x1]
      %v600 = vld [vmem:[%s165 + $0x90] sm:$0xf]
      %v601 = vld [vmem:[%s165 + $0x94] sm:$0xf]
      %v602 = vld [vmem:[%s165 + $0x98] sm:$0x1]
      %v603 = vld [vmem:[%s165 + $0x9c] sm:$0xf]
      %v604 = vld [vmem:[%s165 + $0xa0] sm:$0xf]
      %v605 = vld [vmem:[%s165 + $0xa4] sm:$0x1]
      %v606 = vld [vmem:[%s165 + $0xa8] sm:$0xf]
      %v607 = vld [vmem:[%s165 + $0xac] sm:$0xf]
      %v608 = vld [vmem:[%s165 + $0xb0] sm:$0x1]
      %v609 = vld [vmem:[%s165 + $0xb4] sm:$0xf]
      %v610 = vld [vmem:[%s165 + $0xb8] sm:$0xf]
      %v611 = vld [vmem:[%s165 + $0xbc] sm:$0x1]
      %vm612 = vsmask.f32 3328
      %vm613 = vsmask.f32 7440
      %vm614 = vmor %vm612, %vm613
      %v616 = vshrl.u32 %v564, 16
      %v618 = vrot.slane %v616, 4
      %v619 = vshll.u32 %v564, 16
      %v621 = vrot.slane %v619, 5
      %v622 = vor.u32 %v618, %v621
      %v623 = vrot.slane %v622, 4
      %v625 = vshll.u32 %v565, 16
      %v627 = vrot.slane %v625, 5
      %v628 = vsel %vm614, %v623, %v627
      %v629 = vshrl.u32 %v565, 16
      %v631 = vrot.slane %v629, 4
      %v632 = vor.u32 %v631, %v627
      %v633 = vrot.slane %v632, 4
      %v635 = vshll.u32 %v566, 16
      %v637 = vrot.slane %v635, 5
      %v638 = vsel %vm614, %v633, %v637
      %v640 = vshrl.u32 %v567, 16
      %v642 = vrot.slane %v640, 4
      %v643 = vshll.u32 %v567, 16
      %v645 = vrot.slane %v643, 5
      %v646 = vor.u32 %v642, %v645
      %v647 = vrot.slane %v646, 4
      %v649 = vshll.u32 %v568, 16
      %v651 = vrot.slane %v649, 5
      %v652 = vsel %vm614, %v647, %v651
      %v653 = vshrl.u32 %v568, 16
      %v655 = vrot.slane %v653, 4
      %v656 = vor.u32 %v655, %v651
      %v657 = vrot.slane %v656, 4
      %v659 = vshll.u32 %v569, 16
      %v661 = vrot.slane %v659, 5
      %v662 = vsel %vm614, %v657, %v661
      %v664 = vshrl.u32 %v570, 16
      %v666 = vrot.slane %v664, 4
      %v667 = vshll.u32 %v570, 16
      %v669 = vrot.slane %v667, 5
      %v670 = vor.u32 %v666, %v669
      %v671 = vrot.slane %v670, 4
      %v673 = vshll.u32 %v571, 16
      %v675 = vrot.slane %v673, 5
      %v676 = vsel %vm614, %v671, %v675
      %v677 = vshrl.u32 %v571, 16
      %v679 = vrot.slane %v677, 4
      %v680 = vor.u32 %v679, %v675
      %v681 = vrot.slane %v680, 4
      %v683 = vshll.u32 %v572, 16
      %v685 = vrot.slane %v683, 5
      %v686 = vsel %vm614, %v681, %v685
      %v688 = vshrl.u32 %v573, 16
      %v690 = vrot.slane %v688, 4
      %v691 = vshll.u32 %v573, 16
      %v693 = vrot.slane %v691, 5
      %v694 = vor.u32 %v690, %v693
      %v695 = vrot.slane %v694, 4
      %v697 = vshll.u32 %v574, 16
      %v699 = vrot.slane %v697, 5
      %v700 = vsel %vm614, %v695, %v699
      %v701 = vshrl.u32 %v574, 16
      %v703 = vrot.slane %v701, 4
      %v704 = vor.u32 %v703, %v699
      %v705 = vrot.slane %v704, 4
      %v707 = vshll.u32 %v575, 16
      %v709 = vrot.slane %v707, 5
      %v710 = vsel %vm614, %v705, %v709
      %v712 = vshrl.u32 %v576, 16
      %v714 = vrot.slane %v712, 4
      %v715 = vshll.u32 %v576, 16
      %v717 = vrot.slane %v715, 5
      %v718 = vor.u32 %v714, %v717
      %v719 = vrot.slane %v718, 4
      %v721 = vshll.u32 %v577, 16
      %v723 = vrot.slane %v721, 5
      %v724 = vsel %vm614, %v719, %v723
      %v725 = vshrl.u32 %v577, 16
      %v727 = vrot.slane %v725, 4
      %v728 = vor.u32 %v727, %v723
      %v729 = vrot.slane %v728, 4
      %v731 = vshll.u32 %v578, 16
      %v733 = vrot.slane %v731, 5
      %v734 = vsel %vm614, %v729, %v733
      %v736 = vshrl.u32 %v579, 16
      %v738 = vrot.slane %v736, 4
      %v739 = vshll.u32 %v579, 16
      %v741 = vrot.slane %v739, 5
      %v742 = vor.u32 %v738, %v741
      %v743 = vrot.slane %v742, 4
      %v745 = vshll.u32 %v580, 16
      %v747 = vrot.slane %v745, 5
      %v748 = vsel %vm614, %v743, %v747
      %v749 = vshrl.u32 %v580, 16
      %v751 = vrot.slane %v749, 4
      %v752 = vor.u32 %v751, %v747
      %v753 = vrot.slane %v752, 4
      %v755 = vshll.u32 %v581, 16
      %v757 = vrot.slane %v755, 5
      %v758 = vsel %vm614, %v753, %v757
      %v760 = vshrl.u32 %v582, 16
      %v762 = vrot.slane %v760, 4
      %v763 = vshll.u32 %v582, 16
      %v765 = vrot.slane %v763, 5
      %v766 = vor.u32 %v762, %v765
      %v767 = vrot.slane %v766, 4
      %v769 = vshll.u32 %v583, 16
      %v771 = vrot.slane %v769, 5
      %v772 = vsel %vm614, %v767, %v771
      %v773 = vshrl.u32 %v583, 16
      %v775 = vrot.slane %v773, 4
      %v776 = vor.u32 %v775, %v771
      %v777 = vrot.slane %v776, 4
      %v779 = vshll.u32 %v584, 16
      %v781 = vrot.slane %v779, 5
      %v782 = vsel %vm614, %v777, %v781
      %v784 = vshrl.u32 %v585, 16
      %v786 = vrot.slane %v784, 4
      %v787 = vshll.u32 %v585, 16
      %v789 = vrot.slane %v787, 5
      %v790 = vor.u32 %v786, %v789
      %v791 = vrot.slane %v790, 4
      %v793 = vshll.u32 %v586, 16
      %v795 = vrot.slane %v793, 5
      %v796 = vsel %vm614, %v791, %v795
      %v797 = vshrl.u32 %v586, 16
      %v799 = vrot.slane %v797, 4
      %v800 = vor.u32 %v799, %v795
      %v801 = vrot.slane %v800, 4
      %v803 = vshll.u32 %v587, 16
      %v805 = vrot.slane %v803, 5
      %v806 = vsel %vm614, %v801, %v805
      %v808 = vshrl.u32 %v588, 16
      %v810 = vrot.slane %v808, 4
      %v811 = vshll.u32 %v588, 16
      %v813 = vrot.slane %v811, 5
      %v814 = vor.u32 %v810, %v813
      %v815 = vrot.slane %v814, 4
      %v817 = vshll.u32 %v589, 16
      %v819 = vrot.slane %v817, 5
      %v820 = vsel %vm614, %v815, %v819
      %v821 = vshrl.u32 %v589, 16
      %v823 = vrot.slane %v821, 4
      %v824 = vor.u32 %v823, %v819
      %v825 = vrot.slane %v824, 4
      %v827 = vshll.u32 %v590, 16
      %v829 = vrot.slane %v827, 5
      %v830 = vsel %vm614, %v825, %v829
      %v832 = vshrl.u32 %v591, 16
      %v834 = vrot.slane %v832, 4
      %v835 = vshll.u32 %v591, 16
      %v837 = vrot.slane %v835, 5
      %v838 = vor.u32 %v834, %v837
      %v839 = vrot.slane %v838, 4
      %v841 = vshll.u32 %v592, 16
      %v843 = vrot.slane %v841, 5
      %v844 = vsel %vm614, %v839, %v843
      %v845 = vshrl.u32 %v592, 16
      %v847 = vrot.slane %v845, 4
      %v848 = vor.u32 %v847, %v843
      %v849 = vrot.slane %v848, 4
      %v851 = vshll.u32 %v593, 16
      %v853 = vrot.slane %v851, 5
      %v854 = vsel %vm614, %v849, %v853
      %v856 = vshrl.u32 %v594, 16
      %v858 = vrot.slane %v856, 4
      %v859 = vshll.u32 %v594, 16
      %v861 = vrot.slane %v859, 5
      %v862 = vor.u32 %v858, %v861
      %v863 = vrot.slane %v862, 4
      %v865 = vshll.u32 %v595, 16
      %v867 = vrot.slane %v865, 5
      %v868 = vsel %vm614, %v863, %v867
      %v869 = vshrl.u32 %v595, 16
      %v871 = vrot.slane %v869, 4
      %v872 = vor.u32 %v871, %v867
      %v873 = vrot.slane %v872, 4
      %v875 = vshll.u32 %v596, 16
      %v877 = vrot.slane %v875, 5
      %v878 = vsel %vm614, %v873, %v877
      %v880 = vshrl.u32 %v597, 16
      %v882 = vrot.slane %v880, 4
      %v883 = vshll.u32 %v597, 16
      %v885 = vrot.slane %v883, 5
      %v886 = vor.u32 %v882, %v885
      %v887 = vrot.slane %v886, 4
      %v889 = vshll.u32 %v598, 16
      %v891 = vrot.slane %v889, 5
      %v892 = vsel %vm614, %v887, %v891
      %v893 = vshrl.u32 %v598, 16
      %v895 = vrot.slane %v893, 4
      %v896 = vor.u32 %v895, %v891
      %v897 = vrot.slane %v896, 4
      %v899 = vshll.u32 %v599, 16
      %v901 = vrot.slane %v899, 5
      %v902 = vsel %vm614, %v897, %v901
      %v904 = vshrl.u32 %v600, 16
      %v906 = vrot.slane %v904, 4
      %v907 = vshll.u32 %v600, 16
      %v909 = vrot.slane %v907, 5
      %v910 = vor.u32 %v906, %v909
      %v911 = vrot.slane %v910, 4
      %v913 = vshll.u32 %v601, 16
      %v915 = vrot.slane %v913, 5
      %v916 = vsel %vm614, %v911, %v915
      %v917 = vshrl.u32 %v601, 16
      %v919 = vrot.slane %v917, 4
      %v920 = vor.u32 %v919, %v915
      %v921 = vrot.slane %v920, 4
      %v923 = vshll.u32 %v602, 16
      %v925 = vrot.slane %v923, 5
      %v926 = vsel %vm614, %v921, %v925
      %v928 = vshrl.u32 %v603, 16
      %v930 = vrot.slane %v928, 4
      %v931 = vshll.u32 %v603, 16
      %v933 = vrot.slane %v931, 5
      %v934 = vor.u32 %v930, %v933
      %v935 = vrot.slane %v934, 4
      %v937 = vshll.u32 %v604, 16
      %v939 = vrot.slane %v937, 5
      %v940 = vsel %vm614, %v935, %v939
      %v941 = vshrl.u32 %v604, 16
      %v943 = vrot.slane %v941, 4
      %v944 = vor.u32 %v943, %v939
      %v945 = vrot.slane %v944, 4
      %v947 = vshll.u32 %v605, 16
      %v949 = vrot.slane %v947, 5
      %v950 = vsel %vm614, %v945, %v949
      %v952 = vshrl.u32 %v606, 16
      %v954 = vrot.slane %v952, 4
      %v955 = vshll.u32 %v606, 16
      %v957 = vrot.slane %v955, 5
      %v958 = vor.u32 %v954, %v957
      %v959 = vrot.slane %v958, 4
      %v961 = vshll.u32 %v607, 16
      %v963 = vrot.slane %v961, 5
      %v964 = vsel %vm614, %v959, %v963
      %v965 = vshrl.u32 %v607, 16
      %v967 = vrot.slane %v965, 4
      %v968 = vor.u32 %v967, %v963
      %v969 = vrot.slane %v968, 4
      %v971 = vshll.u32 %v608, 16
      %v973 = vrot.slane %v971, 5
      %v974 = vsel %vm614, %v969, %v973
      %v976 = vshrl.u32 %v609, 16
      %v978 = vrot.slane %v976, 4
      %v979 = vshll.u32 %v609, 16
      %v981 = vrot.slane %v979, 5
      %v982 = vor.u32 %v978, %v981
      %v983 = vrot.slane %v982, 4
      %v985 = vshll.u32 %v610, 16
      %v987 = vrot.slane %v985, 5
      %v988 = vsel %vm614, %v983, %v987
      %v989 = vshrl.u32 %v610, 16
      %v991 = vrot.slane %v989, 4
      %v992 = vor.u32 %v991, %v987
      %v993 = vrot.slane %v992, 4
      %v995 = vshll.u32 %v611, 16
      %v997 = vrot.slane %v995, 5
      %v998 = vsel %vm614, %v993, %v997
      %v999 = vld [vmem:[%s1 + $0x40] sm:$0xf]
      %v1000 = vld [vmem:[%s1 + $0x44] sm:$0xf]
      %v1001 = vld [vmem:[%s1 + $0x48] sm:$0xf]
      %v1002 = vld [vmem:[%s1 + $0x4c] sm:$0xf]
      %v1003 = vld [vmem:[%s1 + $0x50] sm:$0xf]
      %v1004 = vld [vmem:[%s1 + $0x54] sm:$0xf]
      %v1005 = vld [vmem:[%s1 + $0x58] sm:$0xf]
      %v1006 = vld [vmem:[%s1 + $0x5c] sm:$0xf]
      %v1007 = vld [vmem:[%s1 + $0x60] sm:$0xf]
      %v1008 = vld [vmem:[%s1 + $0x64] sm:$0xf]
      %v1009 = vld [vmem:[%s1 + $0x68] sm:$0xf]
      %v1010 = vld [vmem:[%s1 + $0x6c] sm:$0xf]
      %v1011 = vld [vmem:[%s1 + $0x70] sm:$0xf]
      %v1012 = vld [vmem:[%s1 + $0x74] sm:$0xf]
      %v1013 = vld [vmem:[%s1 + $0x78] sm:$0xf]
      %v1014 = vld [vmem:[%s1 + $0x7c] sm:$0xf]
      %v1015 = vunpack.c.l.b16 %v628
      %v1016 = vunpack.c.l.b16 %v638
      %v1017 = vunpack.c.l.b16 %v652
      %v1018 = vunpack.c.l.b16 %v662
      %v1019 = vunpack.c.l.b16 %v676
      %v1020 = vunpack.c.l.b16 %v686
      %v1021 = vunpack.c.l.b16 %v700
      %v1022 = vunpack.c.l.b16 %v710
      %v1023 = vunpack.c.l.b16 %v724
      %v1024 = vunpack.c.l.b16 %v734
      %v1025 = vunpack.c.l.b16 %v748
      %v1026 = vunpack.c.l.b16 %v758
      %v1027 = vunpack.c.l.b16 %v772
      %v1028 = vunpack.c.l.b16 %v782
      %v1029 = vunpack.c.l.b16 %v796
      %v1030 = vunpack.c.l.b16 %v806
      %v1031 = vunpack.c.l.b16 %v820
      %v1032 = vunpack.c.l.b16 %v830
      %v1033 = vunpack.c.l.b16 %v844
      %v1034 = vunpack.c.l.b16 %v854
      %v1035 = vunpack.c.l.b16 %v868
      %v1036 = vunpack.c.l.b16 %v878
      %v1037 = vunpack.c.l.b16 %v892
      %v1038 = vunpack.c.l.b16 %v902
      %v1039 = vunpack.c.l.b16 %v916
      %v1040 = vunpack.c.l.b16 %v926
      %v1041 = vunpack.c.l.b16 %v940
      %v1042 = vunpack.c.l.b16 %v950
      %v1043 = vunpack.c.l.b16 %v964
      %v1044 = vunpack.c.l.b16 %v974
      %v1045 = vunpack.c.l.b16 %v988
      %v1046 = vunpack.c.l.b16 %v998
      %v1047 = vpack.c.b16 %v1016, %v1015
      %v1048 = vpack.c.b16 %v1018, %v1017
      %v1049 = vpack.c.b16 %v1020, %v1019
      %v1050 = vpack.c.b16 %v1022, %v1021
      %v1051 = vpack.c.b16 %v1024, %v1023
      %v1052 = vpack.c.b16 %v1026, %v1025
      %v1053 = vpack.c.b16 %v1028, %v1027
      %v1054 = vpack.c.b16 %v1030, %v1029
      %v1055 = vpack.c.b16 %v1032, %v1031
      %v1056 = vpack.c.b16 %v1034, %v1033
      %v1057 = vpack.c.b16 %v1036, %v1035
      %v1058 = vpack.c.b16 %v1038, %v1037
      %v1059 = vpack.c.b16 %v1040, %v1039
      %v1060 = vpack.c.b16 %v1042, %v1041
      %v1061 = vpack.c.b16 %v1044, %v1043
      %v1062 = vpack.c.b16 %v1046, %v1045
      %v1095 = vunpack.c.l.b16 %v999
      %v1096 = vunpack.c.l.b16 %v1000
      %v1097 = vunpack.c.l.b16 %v1001
      %v1098 = vunpack.c.l.b16 %v1002
      %v1099 = vunpack.c.l.b16 %v1003
      %v1100 = vunpack.c.l.b16 %v1004
      %v1101 = vunpack.c.l.b16 %v1005
      %v1102 = vunpack.c.l.b16 %v1006
      %v1103 = vunpack.c.l.b16 %v1007
      %v1104 = vunpack.c.l.b16 %v1008
      %v1105 = vunpack.c.l.b16 %v1009
      %v1106 = vunpack.c.l.b16 %v1010
      %v1107 = vunpack.c.l.b16 %v1011
      %v1108 = vunpack.c.l.b16 %v1012
      %v1109 = vunpack.c.l.b16 %v1013
      %v1110 = vunpack.c.l.b16 %v1014
      %v1111 = vpack.c.b16 %v1096, %v1095
      %v1112 = vpack.c.b16 %v1098, %v1097
      %v1113 = vpack.c.b16 %v1100, %v1099
      %v1114 = vpack.c.b16 %v1102, %v1101
      %v1115 = vpack.c.b16 %v1104, %v1103
      %v1116 = vpack.c.b16 %v1106, %v1105
      %v1117 = vpack.c.b16 %v1108, %v1107
      %v1118 = vpack.c.b16 %v1110, %v1109
      %1127 = vmatprep.subr.bf16.mxu0 0
      %1128 = vmatpush1.bf16.msra.mxu0 %v1111
      %1129 = vmatprep.subr.bf16.mxu0 0
      %1130 = vmatpush1.bf16.msra.mxu0 %v1112
      %1131 = vmatprep.subr.bf16.mxu0 0
      %1132 = vmatpush1.bf16.msra.mxu0 %v1113
      %1133 = vmatprep.subr.bf16.mxu0 0
      %1134 = vmatpush1.bf16.msra.mxu0 %v1114
      %1135 = vmatprep.subr.bf16.mxu0 0
      %1136 = vmatpush1.bf16.msra.mxu0 %v1115
      %1137 = vmatprep.subr.bf16.mxu0 0
      %1138 = vmatpush1.bf16.msra.mxu0 %v1116
      %1139 = vmatprep.subr.bf16.mxu0 0
      %1140 = vmatpush1.bf16.msra.mxu0 %v1117
      %1141 = vmatprep.subr.bf16.mxu0 0
      %1142 = vmatpush1.bf16.msra.mxu0 %v1118
      %1143 = vmatprep.subr.bf16.mxu0 0
      %1144 = vmatpush1.bf16.msra.mxu0 0
      %1145 = vmatprep.subr.bf16.mxu0 0
      %1146 = vmatpush1.bf16.msra.mxu0 0
      %1147 = vmatprep.subr.bf16.mxu0 0
      %1148 = vmatpush1.bf16.msra.mxu0 0
      %1149 = vmatprep.subr.bf16.mxu0 0
      %1150 = vmatpush1.bf16.msra.mxu0 0
      %1151 = vmatprep.subr.bf16.mxu0 0
      %1152 = vmatpush1.bf16.msra.mxu0 0
      %1153 = vmatprep.subr.bf16.mxu0 0
      %1154 = vmatpush1.bf16.msra.mxu0 0
      %1155 = vmatprep.subr.bf16.mxu0 0
      %1156 = vmatpush1.bf16.msra.mxu0 0
      %1157 = vmatprep.subr.bf16.mxu0 0
      %1158 = vmatpush1.bf16.msra.mxu0 0
      %1159 = vmatprep.mubr.bf16.mxu0 0
      %1160 = vmatmul.mubr.bf16.gmra.mrb[0].mxu0 %v1047
      %v1161 = vpop.f32.mrb[0].mxu0
      %v1162 = vadd.f32 0.0, %v1161
      %v1163 = vpop.f32.mrb[0].mxu0
      %v1164 = vpop.f32.mrb[0].mxu0
      %v1165 = vadd.f32 0.0, %v1164
      %v1166 = vpop.f32.mrb[0].mxu0
      %1167 = vmatprep.mubr.bf16.mxu0 0
      %1168 = vmatmul.mubr.bf16.gmra.mrb[0].mxu0 %v1048
      %v1169 = vpop.f32.mrb[0].mxu0
      %v1170 = vadd.f32 0.0, %v1169
      %v1171 = vpop.f32.mrb[0].mxu0
      %v1172 = vpop.f32.mrb[0].mxu0
      %v1173 = vadd.f32 0.0, %v1172
      %v1174 = vpop.f32.mrb[0].mxu0
      %1175 = vmatprep.mubr.bf16.mxu0 0
      %1176 = vmatmul.mubr.bf16.gmra.mrb[0].mxu0 %v1049
      %v1177 = vpop.f32.mrb[0].mxu0
      %v1178 = vadd.f32 0.0, %v1177
      %v1179 = vpop.f32.mrb[0].mxu0
      %v1180 = vpop.f32.mrb[0].mxu0
      %v1181 = vadd.f32 0.0, %v1180
      %v1182 = vpop.f32.mrb[0].mxu0
      %1183 = vmatprep.mubr.bf16.mxu0 0
      %1184 = vmatmul.mubr.bf16.gmra.mrb[0].mxu0 %v1050
      %v1185 = vpop.f32.mrb[0].mxu0
      %v1186 = vadd.f32 0.0, %v1185
      %v1187 = vpop.f32.mrb[0].mxu0
      %v1188 = vpop.f32.mrb[0].mxu0
      %v1189 = vadd.f32 0.0, %v1188
      %v1190 = vpop.f32.mrb[0].mxu0
      %1191 = vmatprep.mubr.bf16.mxu0 0
      %1192 = vmatmul.mubr.bf16.gmra.mrb[0].mxu0 %v1051
      %v1193 = vpop.f32.mrb[0].mxu0
      %v1194 = vadd.f32 0.0, %v1193
      %v1195 = vpop.f32.mrb[0].mxu0
      %v1196 = vpop.f32.mrb[0].mxu0
      %v1197 = vadd.f32 0.0, %v1196
      %v1198 = vpop.f32.mrb[0].mxu0
      %1199 = vmatprep.mubr.bf16.mxu0 0
      %1200 = vmatmul.mubr.bf16.gmra.mrb[0].mxu0 %v1052
      %v1201 = vpop.f32.mrb[0].mxu0
      %v1202 = vadd.f32 0.0, %v1201
      %v1203 = vpop.f32.mrb[0].mxu0
      %v1204 = vpop.f32.mrb[0].mxu0
      %v1205 = vadd.f32 0.0, %v1204
      %v1206 = vpop.f32.mrb[0].mxu0
      %1207 = vmatprep.mubr.bf16.mxu0 0
      %1208 = vmatmul.mubr.bf16.gmra.mrb[0].mxu0 %v1053
      %v1209 = vpop.f32.mrb[0].mxu0
      %v1210 = vadd.f32 0.0, %v1209
      %v1211 = vpop.f32.mrb[0].mxu0
      %v1212 = vpop.f32.mrb[0].mxu0
      %v1213 = vadd.f32 0.0, %v1212
      %v1214 = vpop.f32.mrb[0].mxu0
      %1215 = vmatprep.mubr.bf16.mxu0 0
      %1216 = vmatmul.mubr.bf16.gmra.mrb[0].mxu0 %v1054
      %v1217 = vpop.f32.mrb[0].mxu0
      %v1218 = vadd.f32 0.0, %v1217
      %v1219 = vpop.f32.mrb[0].mxu0
      %v1220 = vpop.f32.mrb[0].mxu0
      %v1221 = vadd.f32 0.0, %v1220
      %v1222 = vpop.f32.mrb[0].mxu0
      %1223 = vmatprep.mubr.bf16.mxu0 0
      %1224 = vmatmul.mubr.bf16.gmra.mrb[0].mxu0 %v1055
      %v1225 = vpop.f32.mrb[0].mxu0
      %v1226 = vadd.f32 0.0, %v1225
      %v1227 = vpop.f32.mrb[0].mxu0
      %v1228 = vpop.f32.mrb[0].mxu0
      %v1229 = vadd.f32 0.0, %v1228
      %v1230 = vpop.f32.mrb[0].mxu0
      %1231 = vmatprep.mubr.bf16.mxu0 0
      %1232 = vmatmul.mubr.bf16.gmra.mrb[0].mxu0 %v1056
      %v1233 = vpop.f32.mrb[0].mxu0
      %v1234 = vadd.f32 0.0, %v1233
      %v1235 = vpop.f32.mrb[0].mxu0
      %v1236 = vpop.f32.mrb[0].mxu0
      %v1237 = vadd.f32 0.0, %v1236
      %v1238 = vpop.f32.mrb[0].mxu0
      %1239 = vmatprep.mubr.bf16.mxu0 0
      %1240 = vmatmul.mubr.bf16.gmra.mrb[0].mxu0 %v1057
      %v1241 = vpop.f32.mrb[0].mxu0
      %v1242 = vadd.f32 0.0, %v1241
      %v1243 = vpop.f32.mrb[0].mxu0
      %v1244 = vpop.f32.mrb[0].mxu0
      %v1245 = vadd.f32 0.0, %v1244
      %v1246 = vpop.f32.mrb[0].mxu0
      %1247 = vmatprep.mubr.bf16.mxu0 0
      %1248 = vmatmul.mubr.bf16.gmra.mrb[0].mxu0 %v1058
      %v1249 = vpop.f32.mrb[0].mxu0
      %v1250 = vadd.f32 0.0, %v1249
      %v1251 = vpop.f32.mrb[0].mxu0
      %v1252 = vpop.f32.mrb[0].mxu0
      %v1253 = vadd.f32 0.0, %v1252
      %v1254 = vpop.f32.mrb[0].mxu0
      %1255 = vmatprep.mubr.bf16.mxu0 0
      %1256 = vmatmul.mubr.bf16.gmra.mrb[0].mxu0 %v1059
      %v1257 = vpop.f32.mrb[0].mxu0
      %v1258 = vadd.f32 0.0, %v1257
      %v1259 = vpop.f32.mrb[0].mxu0
      %v1260 = vpop.f32.mrb[0].mxu0
      %v1261 = vadd.f32 0.0, %v1260
      %v1262 = vpop.f32.mrb[0].mxu0
      %1263 = vmatprep.mubr.bf16.mxu0 0
      %1264 = vmatmul.mubr.bf16.gmra.mrb[0].mxu0 %v1060
      %v1265 = vpop.f32.mrb[0].mxu0
      %v1266 = vadd.f32 0.0, %v1265
      %v1267 = vpop.f32.mrb[0].mxu0
      %v1268 = vpop.f32.mrb[0].mxu0
      %v1269 = vadd.f32 0.0, %v1268
      %v1270 = vpop.f32.mrb[0].mxu0
      %1271 = vmatprep.mubr.bf16.mxu0 0
      %1272 = vmatmul.mubr.bf16.gmra.mrb[0].mxu0 %v1061
      %v1273 = vpop.f32.mrb[0].mxu0
      %v1274 = vadd.f32 0.0, %v1273
      %v1275 = vpop.f32.mrb[0].mxu0
      %v1276 = vpop.f32.mrb[0].mxu0
      %v1277 = vadd.f32 0.0, %v1276
      %v1278 = vpop.f32.mrb[0].mxu0
      %1279 = vmatprep.mubr.bf16.mxu0 0
      %1280 = vmatmul.mubr.bf16.gmra.mrb[0].mxu0 %v1062
      %v1281 = vpop.f32.mrb[0].mxu0
      %v1282 = vadd.f32 0.0, %v1281
      %v1283 = vpop.f32.mrb[0].mxu0
      %v1284 = vpop.f32.mrb[0].mxu0
      %v1285 = vadd.f32 0.0, %v1284
      %v1286 = vpop.f32.mrb[0].mxu0
      %1287 = vdwg.mxu0
      %v1288 = vadd.f32 %v532, %v1162
      %v1289 = vadd.f32 %v533, %v1165
      %v1290 = vadd.f32 %v534, %v1170
      %v1291 = vadd.f32 %v535, %v1173
      %v1292 = vadd.f32 %v536, %v1178
      %v1293 = vadd.f32 %v537, %v1181
      %v1294 = vadd.f32 %v538, %v1186
      %v1295 = vadd.f32 %v539, %v1189
      %v1296 = vadd.f32 %v540, %v1194
      %v1297 = vadd.f32 %v541, %v1197
      %v1298 = vadd.f32 %v542, %v1202
      %v1299 = vadd.f32 %v543, %v1205
      %v1300 = vadd.f32 %v544, %v1210
      %v1301 = vadd.f32 %v545, %v1213
      %v1302 = vadd.f32 %v546, %v1218
      %v1303 = vadd.f32 %v547, %v1221
      %v1304 = vadd.f32 %v548, %v1226
      %v1305 = vadd.f32 %v549, %v1229
      %v1306 = vadd.f32 %v550, %v1234
      %v1307 = vadd.f32 %v551, %v1237
      %v1308 = vadd.f32 %v552, %v1242
      %v1309 = vadd.f32 %v553, %v1245
      %v1310 = vadd.f32 %v554, %v1250
      %v1311 = vadd.f32 %v555, %v1253
      %v1312 = vadd.f32 %v556, %v1258
      %v1313 = vadd.f32 %v557, %v1261
      %v1314 = vadd.f32 %v558, %v1266
      %v1315 = vadd.f32 %v559, %v1269
      %v1316 = vadd.f32 %v560, %v1274
      %v1317 = vadd.f32 %v561, %v1277
      %v1318 = vadd.f32 %v562, %v1282
      %v1319 = vadd.f32 %v563, %v1285
      %v1320 = vld [vmem:[%s165] sm:$0xe]
      %v1321 = vld [vmem:[%s165 + $0xc] sm:$0xe]
      %v1322 = vld [vmem:[%s165 + $0x18] sm:$0xe]
      %v1323 = vld [vmem:[%s165 + $0x24] sm:$0xe]
      %v1324 = vld [vmem:[%s165 + $0x30] sm:$0xe]
      %v1325 = vld [vmem:[%s165 + $0x3c] sm:$0xe]
      %v1326 = vld [vmem:[%s165 + $0x48] sm:$0xe]
      %v1327 = vld [vmem:[%s165 + $0x54] sm:$0xe]
      %v1328 = vld [vmem:[%s165 + $0x60] sm:$0xe]
      %v1329 = vld [vmem:[%s165 + $0x6c] sm:$0xe]
      %v1330 = vld [vmem:[%s165 + $0x78] sm:$0xe]
      %v1331 = vld [vmem:[%s165 + $0x84] sm:$0xe]
      %v1332 = vld [vmem:[%s165 + $0x90] sm:$0xe]
      %v1333 = vld [vmem:[%s165 + $0x9c] sm:$0xe]
      %v1334 = vld [vmem:[%s165 + $0xa8] sm:$0xe]
      %v1335 = vld [vmem:[%s165 + $0xb4] sm:$0xe]
      %vm1384 = vcmask 1042432
      %vm1385 = vcmask 1046532
      %vm1386 = vmor %vm1384, %vm1385
      %v1387 = vrot.slane %v1320, 5
      %v1388 = vrot.slane %v1387, 4
      %v1389 = vrot.slane %v565, 5
      %v1390 = vsel %vm1386, %v1388, %v1389
      %v1391 = vrot.slane %v1389, 4
      %v1392 = vrot.slane %v566, 5
      %v1393 = vsel %vm1386, %v1391, %v1392
      %v1394 = vrot.slane %v1321, 5
      %v1395 = vrot.slane %v1394, 4
      %v1396 = vrot.slane %v568, 5
      %v1397 = vsel %vm1386, %v1395, %v1396
      %v1398 = vrot.slane %v1396, 4
      %v1399 = vrot.slane %v569, 5
      %v1400 = vsel %vm1386, %v1398, %v1399
      %v1401 = vrot.slane %v1322, 5
      %v1402 = vrot.slane %v1401, 4
      %v1403 = vrot.slane %v571, 5
      %v1404 = vsel %vm1386, %v1402, %v1403
      %v1405 = vrot.slane %v1403, 4
      %v1406 = vrot.slane %v572, 5
      %v1407 = vsel %vm1386, %v1405, %v1406
      %v1408 = vrot.slane %v1323, 5
      %v1409 = vrot.slane %v1408, 4
      %v1410 = vrot.slane %v574, 5
      %v1411 = vsel %vm1386, %v1409, %v1410
      %v1412 = vrot.slane %v1410, 4
      %v1413 = vrot.slane %v575, 5
      %v1414 = vsel %vm1386, %v1412, %v1413
      %v1415 = vrot.slane %v1324, 5
      %v1416 = vrot.slane %v1415, 4
      %v1417 = vrot.slane %v577, 5
      %v1418 = vsel %vm1386, %v1416, %v1417
      %v1419 = vrot.slane %v1417, 4
      %v1420 = vrot.slane %v578, 5
      %v1421 = vsel %vm1386, %v1419, %v1420
      %v1422 = vrot.slane %v1325, 5
      %v1423 = vrot.slane %v1422, 4
      %v1424 = vrot.slane %v580, 5
      %v1425 = vsel %vm1386, %v1423, %v1424
      %v1426 = vrot.slane %v1424, 4
      %v1427 = vrot.slane %v581, 5
      %v1428 = vsel %vm1386, %v1426, %v1427
      %v1429 = vrot.slane %v1326, 5
      %v1430 = vrot.slane %v1429, 4
      %v1431 = vrot.slane %v583, 5
      %v1432 = vsel %vm1386, %v1430, %v1431
      %v1433 = vrot.slane %v1431, 4
      %v1434 = vrot.slane %v584, 5
      %v1435 = vsel %vm1386, %v1433, %v1434
      %v1436 = vrot.slane %v1327, 5
      %v1437 = vrot.slane %v1436, 4
      %v1438 = vrot.slane %v586, 5
      %v1439 = vsel %vm1386, %v1437, %v1438
      %v1440 = vrot.slane %v1438, 4
      %v1441 = vrot.slane %v587, 5
      %v1442 = vsel %vm1386, %v1440, %v1441
      %v1443 = vrot.slane %v1328, 5
      %v1444 = vrot.slane %v1443, 4
      %v1445 = vrot.slane %v589, 5
      %v1446 = vsel %vm1386, %v1444, %v1445
      %v1447 = vrot.slane %v1445, 4
      %v1448 = vrot.slane %v590, 5
      %v1449 = vsel %vm1386, %v1447, %v1448
      %v1450 = vrot.slane %v1329, 5
      %v1451 = vrot.slane %v1450, 4
      %v1452 = vrot.slane %v592, 5
      %v1453 = vsel %vm1386, %v1451, %v1452
      %v1454 = vrot.slane %v1452, 4
      %v1455 = vrot.slane %v593, 5
      %v1456 = vsel %vm1386, %v1454, %v1455
      %v1457 = vrot.slane %v1330, 5
      %v1458 = vrot.slane %v1457, 4
      %v1459 = vrot.slane %v595, 5
      %v1460 = vsel %vm1386, %v1458, %v1459
      %v1461 = vrot.slane %v1459, 4
      %v1462 = vrot.slane %v596, 5
      %v1463 = vsel %vm1386, %v1461, %v1462
      %v1464 = vrot.slane %v1331, 5
      %v1465 = vrot.slane %v1464, 4
      %v1466 = vrot.slane %v598, 5
      %v1467 = vsel %vm1386, %v1465, %v1466
      %v1468 = vrot.slane %v1466, 4
      %v1469 = vrot.slane %v599, 5
      %v1470 = vsel %vm1386, %v1468, %v1469
      %v1471 = vrot.slane %v1332, 5
      %v1472 = vrot.slane %v1471, 4
      %v1473 = vrot.slane %v601, 5
      %v1474 = vsel %vm1386, %v1472, %v1473
      %v1475 = vrot.slane %v1473, 4
      %v1476 = vrot.slane %v602, 5
      %v1477 = vsel %vm1386, %v1475, %v1476
      %v1478 = vrot.slane %v1333, 5
      %v1479 = vrot.slane %v1478, 4
      %v1480 = vrot.slane %v604, 5
      %v1481 = vsel %vm1386, %v1479, %v1480
      %v1482 = vrot.slane %v1480, 4
      %v1483 = vrot.slane %v605, 5
      %v1484 = vsel %vm1386, %v1482, %v1483
      %v1485 = vrot.slane %v1334, 5
      %v1486 = vrot.slane %v1485, 4
      %v1487 = vrot.slane %v607, 5
      %v1488 = vsel %vm1386, %v1486, %v1487
      %v1489 = vrot.slane %v1487, 4
      %v1490 = vrot.slane %v608, 5
      %v1491 = vsel %vm1386, %v1489, %v1490
      %v1492 = vrot.slane %v1335, 5
      %v1493 = vrot.slane %v1492, 4
      %v1494 = vrot.slane %v610, 5
      %v1495 = vsel %vm1386, %v1493, %v1494
      %v1496 = vrot.slane %v1494, 4
      %v1497 = vrot.slane %v611, 5
      %v1498 = vsel %vm1386, %v1496, %v1497
      %v1499 = vld [vmem:[%s1 + $0x80] sm:$0xf]
      %v1500 = vld [vmem:[%s1 + $0x84] sm:$0xf]
      %v1501 = vld [vmem:[%s1 + $0x88] sm:$0xf]
      %v1502 = vld [vmem:[%s1 + $0x8c] sm:$0xf]
      %v1503 = vld [vmem:[%s1 + $0x90] sm:$0xf]
      %v1504 = vld [vmem:[%s1 + $0x94] sm:$0xf]
      %v1505 = vld [vmem:[%s1 + $0x98] sm:$0xf]
      %v1506 = vld [vmem:[%s1 + $0x9c] sm:$0xf]
      %v1507 = vld [vmem:[%s1 + $0xa0] sm:$0xf]
      %v1508 = vld [vmem:[%s1 + $0xa4] sm:$0xf]
      %v1509 = vld [vmem:[%s1 + $0xa8] sm:$0xf]
      %v1510 = vld [vmem:[%s1 + $0xac] sm:$0xf]
      %v1511 = vld [vmem:[%s1 + $0xb0] sm:$0xf]
      %v1512 = vld [vmem:[%s1 + $0xb4] sm:$0xf]
      %v1513 = vld [vmem:[%s1 + $0xb8] sm:$0xf]
      %v1514 = vld [vmem:[%s1 + $0xbc] sm:$0xf]
      %v1515 = vunpack.c.l.b16 %v1390
      %v1516 = vunpack.c.l.b16 %v1393
      %v1517 = vunpack.c.l.b16 %v1397
      %v1518 = vunpack.c.l.b16 %v1400
      %v1519 = vunpack.c.l.b16 %v1404
      %v1520 = vunpack.c.l.b16 %v1407
      %v1521 = vunpack.c.l.b16 %v1411
      %v1522 = vunpack.c.l.b16 %v1414
      %v1523 = vunpack.c.l.b16 %v1418
      %v1524 = vunpack.c.l.b16 %v1421
      %v1525 = vunpack.c.l.b16 %v1425
      %v1526 = vunpack.c.l.b16 %v1428
      %v1527 = vunpack.c.l.b16 %v1432
      %v1528 = vunpack.c.l.b16 %v1435
      %v1529 = vunpack.c.l.b16 %v1439
      %v1530 = vunpack.c.l.b16 %v1442
      %v1531 = vunpack.c.l.b16 %v1446
      %v1532 = vunpack.c.l.b16 %v1449
      %v1533 = vunpack.c.l.b16 %v1453
      %v1534 = vunpack.c.l.b16 %v1456
      %v1535 = vunpack.c.l.b16 %v1460
      %v1536 = vunpack.c.l.b16 %v1463
      %v1537 = vunpack.c.l.b16 %v1467
      %v1538 = vunpack.c.l.b16 %v1470
      %v1539 = vunpack.c.l.b16 %v1474
      %v1540 = vunpack.c.l.b16 %v1477
      %v1541 = vunpack.c.l.b16 %v1481
      %v1542 = vunpack.c.l.b16 %v1484
      %v1543 = vunpack.c.l.b16 %v1488
      %v1544 = vunpack.c.l.b16 %v1491
      %v1545 = vunpack.c.l.b16 %v1495
      %v1546 = vunpack.c.l.b16 %v1498
      %v1547 = vpack.c.b16 %v1516, %v1515
      %v1548 = vpack.c.b16 %v1518, %v1517
      %v1549 = vpack.c.b16 %v1520, %v1519
      %v1550 = vpack.c.b16 %v1522, %v1521
      %v1551 = vpack.c.b16 %v1524, %v1523
      %v1552 = vpack.c.b16 %v1526, %v1525
      %v1553 = vpack.c.b16 %v1528, %v1527
      %v1554 = vpack.c.b16 %v1530, %v1529
      %v1555 = vpack.c.b16 %v1532, %v1531
      %v1556 = vpack.c.b16 %v1534, %v1533
      %v1557 = vpack.c.b16 %v1536, %v1535
      %v1558 = vpack.c.b16 %v1538, %v1537
      %v1559 = vpack.c.b16 %v1540, %v1539
      %v1560 = vpack.c.b16 %v1542, %v1541
      %v1561 = vpack.c.b16 %v1544, %v1543
      %v1562 = vpack.c.b16 %v1546, %v1545
      %v1595 = vunpack.c.l.b16 %v1499
      %v1596 = vunpack.c.l.b16 %v1500
      %v1597 = vunpack.c.l.b16 %v1501
      %v1598 = vunpack.c.l.b16 %v1502
      %v1599 = vunpack.c.l.b16 %v1503
      %v1600 = vunpack.c.l.b16 %v1504
      %v1601 = vunpack.c.l.b16 %v1505
      %v1602 = vunpack.c.l.b16 %v1506
      %v1603 = vunpack.c.l.b16 %v1507
      %v1604 = vunpack.c.l.b16 %v1508
      %v1605 = vunpack.c.l.b16 %v1509
      %v1606 = vunpack.c.l.b16 %v1510
      %v1607 = vunpack.c.l.b16 %v1511
      %v1608 = vunpack.c.l.b16 %v1512
      %v1609 = vunpack.c.l.b16 %v1513
      %v1610 = vunpack.c.l.b16 %v1514
      %v1611 = vpack.c.b16 %v1596, %v1595
      %v1612 = vpack.c.b16 %v1598, %v1597
      %v1613 = vpack.c.b16 %v1600, %v1599
      %v1614 = vpack.c.b16 %v1602, %v1601
      %v1615 = vpack.c.b16 %v1604, %v1603
      %v1616 = vpack.c.b16 %v1606, %v1605
      %v1617 = vpack.c.b16 %v1608, %v1607
      %v1618 = vpack.c.b16 %v1610, %v1609
      %1627 = vmatprep.subr.bf16.mxu0 0
      %1628 = vmatpush1.bf16.msra.mxu0 %v1611
      %1629 = vmatprep.subr.bf16.mxu0 0
      %1630 = vmatpush1.bf16.msra.mxu0 %v1612
      %1631 = vmatprep.subr.bf16.mxu0 0
      %1632 = vmatpush1.bf16.msra.mxu0 %v1613
      %1633 = vmatprep.subr.bf16.mxu0 0
      %1634 = vmatpush1.bf16.msra.mxu0 %v1614
      %1635 = vmatprep.subr.bf16.mxu0 0
      %1636 = vmatpush1.bf16.msra.mxu0 %v1615
      %1637 = vmatprep.subr.bf16.mxu0 0
      %1638 = vmatpush1.bf16.msra.mxu0 %v1616
      %1639 = vmatprep.subr.bf16.mxu0 0
      %1640 = vmatpush1.bf16.msra.mxu0 %v1617
      %1641 = vmatprep.subr.bf16.mxu0 0
      %1642 = vmatpush1.bf16.msra.mxu0 %v1618
      %1643 = vmatprep.subr.bf16.mxu0 0
      %1644 = vmatpush1.bf16.msra.mxu0 0
      %1645 = vmatprep.subr.bf16.mxu0 0
      %1646 = vmatpush1.bf16.msra.mxu0 0
      %1647 = vmatprep.subr.bf16.mxu0 0
      %1648 = vmatpush1.bf16.msra.mxu0 0
      %1649 = vmatprep.subr.bf16.mxu0 0
      %1650 = vmatpush1.bf16.msra.mxu0 0
      %1651 = vmatprep.subr.bf16.mxu0 0
      %1652 = vmatpush1.bf16.msra.mxu0 0
      %1653 = vmatprep.subr.bf16.mxu0 0
      %1654 = vmatpush1.bf16.msra.mxu0 0
      %1655 = vmatprep.subr.bf16.mxu0 0
      %1656 = vmatpush1.bf16.msra.mxu0 0
      %1657 = vmatprep.subr.bf16.mxu0 0
      %1658 = vmatpush1.bf16.msra.mxu0 0
      %1659 = vmatprep.mubr.bf16.mxu0 0
      %1660 = vmatmul.mubr.bf16.gmra.mrb[0].mxu0 %v1547
      %v1661 = vpop.f32.mrb[0].mxu0
      %v1662 = vadd.f32 0.0, %v1661
      %v1663 = vpop.f32.mrb[0].mxu0
      %v1664 = vpop.f32.mrb[0].mxu0
      %v1665 = vadd.f32 0.0, %v1664
      %v1666 = vpop.f32.mrb[0].mxu0
      %1667 = vmatprep.mubr.bf16.mxu0 0
      %1668 = vmatmul.mubr.bf16.gmra.mrb[0].mxu0 %v1548
      %v1669 = vpop.f32.mrb[0].mxu0
      %v1670 = vadd.f32 0.0, %v1669
      %v1671 = vpop.f32.mrb[0].mxu0
      %v1672 = vpop.f32.mrb[0].mxu0
      %v1673 = vadd.f32 0.0, %v1672
      %v1674 = vpop.f32.mrb[0].mxu0
      %1675 = vmatprep.mubr.bf16.mxu0 0
      %1676 = vmatmul.mubr.bf16.gmra.mrb[0].mxu0 %v1549
      %v1677 = vpop.f32.mrb[0].mxu0
      %v1678 = vadd.f32 0.0, %v1677
      %v1679 = vpop.f32.mrb[0].mxu0
      %v1680 = vpop.f32.mrb[0].mxu0
      %v1681 = vadd.f32 0.0, %v1680
      %v1682 = vpop.f32.mrb[0].mxu0
      %1683 = vmatprep.mubr.bf16.mxu0 0
      %1684 = vmatmul.mubr.bf16.gmra.mrb[0].mxu0 %v1550
      %v1685 = vpop.f32.mrb[0].mxu0
      %v1686 = vadd.f32 0.0, %v1685
      %v1687 = vpop.f32.mrb[0].mxu0
      %v1688 = vpop.f32.mrb[0].mxu0
      %v1689 = vadd.f32 0.0, %v1688
      %v1690 = vpop.f32.mrb[0].mxu0
      %1691 = vmatprep.mubr.bf16.mxu0 0
      %1692 = vmatmul.mubr.bf16.gmra.mrb[0].mxu0 %v1551
      %v1693 = vpop.f32.mrb[0].mxu0
      %v1694 = vadd.f32 0.0, %v1693
      %v1695 = vpop.f32.mrb[0].mxu0
      %v1696 = vpop.f32.mrb[0].mxu0
      %v1697 = vadd.f32 0.0, %v1696
      %v1698 = vpop.f32.mrb[0].mxu0
      %1699 = vmatprep.mubr.bf16.mxu0 0
      %1700 = vmatmul.mubr.bf16.gmra.mrb[0].mxu0 %v1552
      %v1701 = vpop.f32.mrb[0].mxu0
      %v1702 = vadd.f32 0.0, %v1701
      %v1703 = vpop.f32.mrb[0].mxu0
      %v1704 = vpop.f32.mrb[0].mxu0
      %v1705 = vadd.f32 0.0, %v1704
      %v1706 = vpop.f32.mrb[0].mxu0
      %1707 = vmatprep.mubr.bf16.mxu0 0
      %1708 = vmatmul.mubr.bf16.gmra.mrb[0].mxu0 %v1553
      %v1709 = vpop.f32.mrb[0].mxu0
      %v1710 = vadd.f32 0.0, %v1709
      %v1711 = vpop.f32.mrb[0].mxu0
      %v1712 = vpop.f32.mrb[0].mxu0
      %v1713 = vadd.f32 0.0, %v1712
      %v1714 = vpop.f32.mrb[0].mxu0
      %1715 = vmatprep.mubr.bf16.mxu0 0
      %1716 = vmatmul.mubr.bf16.gmra.mrb[0].mxu0 %v1554
      %v1717 = vpop.f32.mrb[0].mxu0
      %v1718 = vadd.f32 0.0, %v1717
      %v1719 = vpop.f32.mrb[0].mxu0
      %v1720 = vpop.f32.mrb[0].mxu0
      %v1721 = vadd.f32 0.0, %v1720
      %v1722 = vpop.f32.mrb[0].mxu0
      %1723 = vmatprep.mubr.bf16.mxu0 0
      %1724 = vmatmul.mubr.bf16.gmra.mrb[0].mxu0 %v1555
      %v1725 = vpop.f32.mrb[0].mxu0
      %v1726 = vadd.f32 0.0, %v1725
      %v1727 = vpop.f32.mrb[0].mxu0
      %v1728 = vpop.f32.mrb[0].mxu0
      %v1729 = vadd.f32 0.0, %v1728
      %v1730 = vpop.f32.mrb[0].mxu0
      %1731 = vmatprep.mubr.bf16.mxu0 0
      %1732 = vmatmul.mubr.bf16.gmra.mrb[0].mxu0 %v1556
      %v1733 = vpop.f32.mrb[0].mxu0
      %v1734 = vadd.f32 0.0, %v1733
      %v1735 = vpop.f32.mrb[0].mxu0
      %v1736 = vpop.f32.mrb[0].mxu0
      %v1737 = vadd.f32 0.0, %v1736
      %v1738 = vpop.f32.mrb[0].mxu0
      %1739 = vmatprep.mubr.bf16.mxu0 0
      %1740 = vmatmul.mubr.bf16.gmra.mrb[0].mxu0 %v1557
      %v1741 = vpop.f32.mrb[0].mxu0
      %v1742 = vadd.f32 0.0, %v1741
      %v1743 = vpop.f32.mrb[0].mxu0
      %v1744 = vpop.f32.mrb[0].mxu0
      %v1745 = vadd.f32 0.0, %v1744
      %v1746 = vpop.f32.mrb[0].mxu0
      %1747 = vmatprep.mubr.bf16.mxu0 0
      %1748 = vmatmul.mubr.bf16.gmra.mrb[0].mxu0 %v1558
      %v1749 = vpop.f32.mrb[0].mxu0
      %v1750 = vadd.f32 0.0, %v1749
      %v1751 = vpop.f32.mrb[0].mxu0
      %v1752 = vpop.f32.mrb[0].mxu0
      %v1753 = vadd.f32 0.0, %v1752
      %v1754 = vpop.f32.mrb[0].mxu0
      %1755 = vmatprep.mubr.bf16.mxu0 0
      %1756 = vmatmul.mubr.bf16.gmra.mrb[0].mxu0 %v1559
      %v1757 = vpop.f32.mrb[0].mxu0
      %v1758 = vadd.f32 0.0, %v1757
      %v1759 = vpop.f32.mrb[0].mxu0
      %v1760 = vpop.f32.mrb[0].mxu0
      %v1761 = vadd.f32 0.0, %v1760
      %v1762 = vpop.f32.mrb[0].mxu0
      %1763 = vmatprep.mubr.bf16.mxu0 0
      %1764 = vmatmul.mubr.bf16.gmra.mrb[0].mxu0 %v1560
      %v1765 = vpop.f32.mrb[0].mxu0
      %v1766 = vadd.f32 0.0, %v1765
      %v1767 = vpop.f32.mrb[0].mxu0
      %v1768 = vpop.f32.mrb[0].mxu0
      %v1769 = vadd.f32 0.0, %v1768
      %v1770 = vpop.f32.mrb[0].mxu0
      %1771 = vmatprep.mubr.bf16.mxu0 0
      %1772 = vmatmul.mubr.bf16.gmra.mrb[0].mxu0 %v1561
      %v1773 = vpop.f32.mrb[0].mxu0
      %v1774 = vadd.f32 0.0, %v1773
      %v1775 = vpop.f32.mrb[0].mxu0
      %v1776 = vpop.f32.mrb[0].mxu0
      %v1777 = vadd.f32 0.0, %v1776
      %v1778 = vpop.f32.mrb[0].mxu0
      %1779 = vmatprep.mubr.bf16.mxu0 0
      %1780 = vmatmul.mubr.bf16.gmra.mrb[0].mxu0 %v1562
      %v1781 = vpop.f32.mrb[0].mxu0
      %v1782 = vadd.f32 0.0, %v1781
      %v1783 = vpop.f32.mrb[0].mxu0
      %v1784 = vpop.f32.mrb[0].mxu0
      %v1785 = vadd.f32 0.0, %v1784
      %v1786 = vpop.f32.mrb[0].mxu0
      %1787 = vdwg.mxu0
      %v1788 = vadd.f32 %v1288, %v1662
      %v1789 = vadd.f32 %v1289, %v1665
      %v1790 = vadd.f32 %v1290, %v1670
      %v1791 = vadd.f32 %v1291, %v1673
      %v1792 = vadd.f32 %v1292, %v1678
      %v1793 = vadd.f32 %v1293, %v1681
      %v1794 = vadd.f32 %v1294, %v1686
      %v1795 = vadd.f32 %v1295, %v1689
      %v1796 = vadd.f32 %v1296, %v1694
      %v1797 = vadd.f32 %v1297, %v1697
      %v1798 = vadd.f32 %v1298, %v1702
      %v1799 = vadd.f32 %v1299, %v1705
      %v1800 = vadd.f32 %v1300, %v1710
      %v1801 = vadd.f32 %v1301, %v1713
      %v1802 = vadd.f32 %v1302, %v1718
      %v1803 = vadd.f32 %v1303, %v1721
      %v1804 = vadd.f32 %v1304, %v1726
      %v1805 = vadd.f32 %v1305, %v1729
      %v1806 = vadd.f32 %v1306, %v1734
      %v1807 = vadd.f32 %v1307, %v1737
      %v1808 = vadd.f32 %v1308, %v1742
      %v1809 = vadd.f32 %v1309, %v1745
      %v1810 = vadd.f32 %v1310, %v1750
      %v1811 = vadd.f32 %v1311, %v1753
      %v1812 = vadd.f32 %v1312, %v1758
      %v1813 = vadd.f32 %v1313, %v1761
      %v1814 = vadd.f32 %v1314, %v1766
      %v1815 = vadd.f32 %v1315, %v1769
      %v1816 = vadd.f32 %v1316, %v1774
      %v1817 = vadd.f32 %v1317, %v1777
      %v1818 = vadd.f32 %v1318, %v1782
      %v1819 = vadd.f32 %v1319, %v1785
      %1820 = vst [vmem:[%s170] sm:$0xff] %v1788
      %1821 = vst [vmem:[%s170 + $0x8] sm:$0xff] %v1789
      %1822 = vst [vmem:[%s170 + $0x10] sm:$0xff] %v1790
      %1823 = vst [vmem:[%s170 + $0x18] sm:$0xff] %v1791
      %1824 = vst [vmem:[%s170 + $0x20] sm:$0xff] %v1792
      %1825 = vst [vmem:[%s170 + $0x28] sm:$0xff] %v1793
      %1826 = vst [vmem:[%s170 + $0x30] sm:$0xff] %v1794
      %1827 = vst [vmem:[%s170 + $0x38] sm:$0xff] %v1795
      %1828 = vst [vmem:[%s170 + $0x40] sm:$0xff] %v1796
      %1829 = vst [vmem:[%s170 + $0x48] sm:$0xff] %v1797
      %1830 = vst [vmem:[%s170 + $0x50] sm:$0xff] %v1798
      %1831 = vst [vmem:[%s170 + $0x58] sm:$0xff] %v1799
      %1832 = vst [vmem:[%s170 + $0x60] sm:$0xff] %v1800
      %1833 = vst [vmem:[%s170 + $0x68] sm:$0xff] %v1801
      %1834 = vst [vmem:[%s170 + $0x70] sm:$0xff] %v1802
      %1835 = vst [vmem:[%s170 + $0x78] sm:$0xff] %v1803
      %1836 = vst [vmem:[%s170 + $0x80] sm:$0xff] %v1804
      %1837 = vst [vmem:[%s170 + $0x88] sm:$0xff] %v1805
      %1838 = vst [vmem:[%s170 + $0x90] sm:$0xff] %v1806
      %1839 = vst [vmem:[%s170 + $0x98] sm:$0xff] %v1807
      %1840 = vst [vmem:[%s170 + $0xa0] sm:$0xff] %v1808
      %1841 = vst [vmem:[%s170 + $0xa8] sm:$0xff] %v1809
      %1842 = vst [vmem:[%s170 + $0xb0] sm:$0xff] %v1810
      %1843 = vst [vmem:[%s170 + $0xb8] sm:$0xff] %v1811
      %1844 = vst [vmem:[%s170 + $0xc0] sm:$0xff] %v1812
      %1845 = vst [vmem:[%s170 + $0xc8] sm:$0xff] %v1813
      %1846 = vst [vmem:[%s170 + $0xd0] sm:$0xff] %v1814
      %1847 = vst [vmem:[%s170 + $0xd8] sm:$0xff] %v1815
      %1848 = vst [vmem:[%s170 + $0xe0] sm:$0xff] %v1816
      %1849 = vst [vmem:[%s170 + $0xe8] sm:$0xff] %v1817
      %1850 = vst [vmem:[%s170 + $0xf0] sm:$0xff] %v1818
      %1851 = vst [vmem:[%s170 + $0xf8] sm:$0xff] %v1819
      %s1852 = scalar_lea.vmem %s165, 12
      %v1853 = vld [vmem:[%s1852] sm:$0xf]
      %v1854 = vld [vmem:[%s1852 + $0x4] sm:$0xf]
      %v1855 = vld [vmem:[%s1852 + $0xc] sm:$0xf]
      %v1856 = vld [vmem:[%s1852 + $0x10] sm:$0xf]
      %v1857 = vld [vmem:[%s1852 + $0x18] sm:$0xf]
      %v1858 = vld [vmem:[%s1852 + $0x1c] sm:$0xf]
      %v1859 = vld [vmem:[%s1852 + $0x24] sm:$0xf]
      %v1860 = vld [vmem:[%s1852 + $0x28] sm:$0xf]
      %v1861 = vld [vmem:[%s1852 + $0x30] sm:$0xf]
      %v1862 = vld [vmem:[%s1852 + $0x34] sm:$0xf]
      %v1863 = vld [vmem:[%s1852 + $0x3c] sm:$0xf]
      %v1864 = vld [vmem:[%s1852 + $0x40] sm:$0xf]
      %v1865 = vld [vmem:[%s1852 + $0x48] sm:$0xf]
      %v1866 = vld [vmem:[%s1852 + $0x4c] sm:$0xf]
      %v1867 = vld [vmem:[%s1852 + $0x54] sm:$0xf]
      %v1868 = vld [vmem:[%s1852 + $0x58] sm:$0xf]
      %v1869 = vld [vmem:[%s1852 + $0x60] sm:$0xf]
      %v1870 = vld [vmem:[%s1852 + $0x64] sm:$0xf]
      %v1871 = vld [vmem:[%s1852 + $0x6c] sm:$0xf]
      %v1872 = vld [vmem:[%s1852 + $0x70] sm:$0xf]
      %v1873 = vld [vmem:[%s1852 + $0x78] sm:$0xf]
      %v1874 = vld [vmem:[%s1852 + $0x7c] sm:$0xf]
      %v1875 = vld [vmem:[%s1852 + $0x84] sm:$0xf]
      %v1876 = vld [vmem:[%s1852 + $0x88] sm:$0xf]
      %v1877 = vld [vmem:[%s1852 + $0x90] sm:$0xf]
      %v1878 = vld [vmem:[%s1852 + $0x94] sm:$0xf]
      %v1879 = vld [vmem:[%s1852 + $0x9c] sm:$0xf]
      %v1880 = vld [vmem:[%s1852 + $0xa0] sm:$0xf]
      %v1881 = vld [vmem:[%s1852 + $0xa8] sm:$0xf]
      %v1882 = vld [vmem:[%s1852 + $0xac] sm:$0xf]
      %v1883 = vld [vmem:[%s1852 + $0xb4] sm:$0xf]
      %v1884 = vld [vmem:[%s1852 + $0xb8] sm:$0xf]
      %s1885 = scalar_lea.vmem %s1, 192
      %v1886 = vld [vmem:[%s1885] sm:$0xf]
      %v1887 = vld [vmem:[%s1885 + $0x4] sm:$0xf]
      %v1888 = vld [vmem:[%s1885 + $0x8] sm:$0xf]
      %v1889 = vld [vmem:[%s1885 + $0xc] sm:$0xf]
      %v1890 = vld [vmem:[%s1885 + $0x10] sm:$0xf]
      %v1891 = vld [vmem:[%s1885 + $0x14] sm:$0xf]
      %v1892 = vld [vmem:[%s1885 + $0x18] sm:$0xf]
      %v1893 = vld [vmem:[%s1885 + $0x1c] sm:$0xf]
      %v1894 = vld [vmem:[%s1885 + $0x20] sm:$0xf]
      %v1895 = vld [vmem:[%s1885 + $0x24] sm:$0xf]
      %v1896 = vld [vmem:[%s1885 + $0x28] sm:$0xf]
      %v1897 = vld [vmem:[%s1885 + $0x2c] sm:$0xf]
      %v1898 = vld [vmem:[%s1885 + $0x30] sm:$0xf]
      %v1899 = vld [vmem:[%s1885 + $0x34] sm:$0xf]
      %v1900 = vld [vmem:[%s1885 + $0x38] sm:$0xf]
      %v1901 = vld [vmem:[%s1885 + $0x3c] sm:$0xf]
      %v1934 = vunpack.c.l.b16 %v1853
      %v1935 = vunpack.c.l.b16 %v1854
      %v1936 = vunpack.c.l.b16 %v1855
      %v1937 = vunpack.c.l.b16 %v1856
      %v1938 = vunpack.c.l.b16 %v1857
      %v1939 = vunpack.c.l.b16 %v1858
      %v1940 = vunpack.c.l.b16 %v1859
      %v1941 = vunpack.c.l.b16 %v1860
      %v1942 = vunpack.c.l.b16 %v1861
      %v1943 = vunpack.c.l.b16 %v1862
      %v1944 = vunpack.c.l.b16 %v1863
      %v1945 = vunpack.c.l.b16 %v1864
      %v1946 = vunpack.c.l.b16 %v1865
      %v1947 = vunpack.c.l.b16 %v1866
      %v1948 = vunpack.c.l.b16 %v1867
      %v1949 = vunpack.c.l.b16 %v1868
      %v1950 = vunpack.c.l.b16 %v1869
      %v1951 = vunpack.c.l.b16 %v1870
      %v1952 = vunpack.c.l.b16 %v1871
      %v1953 = vunpack.c.l.b16 %v1872
      %v1954 = vunpack.c.l.b16 %v1873
      %v1955 = vunpack.c.l.b16 %v1874
      %v1956 = vunpack.c.l.b16 %v1875
      %v1957 = vunpack.c.l.b16 %v1876
      %v1958 = vunpack.c.l.b16 %v1877
      %v1959 = vunpack.c.l.b16 %v1878
      %v1960 = vunpack.c.l.b16 %v1879
      %v1961 = vunpack.c.l.b16 %v1880
      %v1962 = vunpack.c.l.b16 %v1881
      %v1963 = vunpack.c.l.b16 %v1882
      %v1964 = vunpack.c.l.b16 %v1883
      %v1965 = vunpack.c.l.b16 %v1884
      %v1966 = vpack.c.b16 %v1935, %v1934
      %v1967 = vpack.c.b16 %v1937, %v1936
      %v1968 = vpack.c.b16 %v1939, %v1938
      %v1969 = vpack.c.b16 %v1941, %v1940
      %v1970 = vpack.c.b16 %v1943, %v1942
      %v1971 = vpack.c.b16 %v1945, %v1944
      %v1972 = vpack.c.b16 %v1947, %v1946
      %v1973 = vpack.c.b16 %v1949, %v1948
      %v1974 = vpack.c.b16 %v1951, %v1950
      %v1975 = vpack.c.b16 %v1953, %v1952
      %v1976 = vpack.c.b16 %v1955, %v1954
      %v1977 = vpack.c.b16 %v1957, %v1956
      %v1978 = vpack.c.b16 %v1959, %v1958
      %v1979 = vpack.c.b16 %v1961, %v1960
      %v1980 = vpack.c.b16 %v1963, %v1962
      %v1981 = vpack.c.b16 %v1965, %v1964
      %v2014 = vunpack.c.l.b16 %v1886
      %v2015 = vunpack.c.l.b16 %v1887
      %v2016 = vunpack.c.l.b16 %v1888
      %v2017 = vunpack.c.l.b16 %v1889
      %v2018 = vunpack.c.l.b16 %v1890
      %v2019 = vunpack.c.l.b16 %v1891
      %v2020 = vunpack.c.l.b16 %v1892
      %v2021 = vunpack.c.l.b16 %v1893
      %v2022 = vunpack.c.l.b16 %v1894
      %v2023 = vunpack.c.l.b16 %v1895
      %v2024 = vunpack.c.l.b16 %v1896
      %v2025 = vunpack.c.l.b16 %v1897
      %v2026 = vunpack.c.l.b16 %v1898
      %v2027 = vunpack.c.l.b16 %v1899
      %v2028 = vunpack.c.l.b16 %v1900
      %v2029 = vunpack.c.l.b16 %v1901
      %v2030 = vpack.c.b16 %v2015, %v2014
      %v2031 = vpack.c.b16 %v2017, %v2016
      %v2032 = vpack.c.b16 %v2019, %v2018
      %v2033 = vpack.c.b16 %v2021, %v2020
      %v2034 = vpack.c.b16 %v2023, %v2022
      %v2035 = vpack.c.b16 %v2025, %v2024
      %v2036 = vpack.c.b16 %v2027, %v2026
      %v2037 = vpack.c.b16 %v2029, %v2028
      %2046 = vmatprep.subr.bf16.mxu0 0
      %2047 = vmatpush1.bf16.msra.mxu0 %v2030
      %2048 = vmatprep.subr.bf16.mxu0 0
      %2049 = vmatpush1.bf16.msra.mxu0 %v2031
      %2050 = vmatprep.subr.bf16.mxu0 0
      %2051 = vmatpush1.bf16.msra.mxu0 %v2032
      %2052 = vmatprep.subr.bf16.mxu0 0
      %2053 = vmatpush1.bf16.msra.mxu0 %v2033
      %2054 = vmatprep.subr.bf16.mxu0 0
      %2055 = vmatpush1.bf16.msra.mxu0 %v2034
      %2056 = vmatprep.subr.bf16.mxu0 0
      %2057 = vmatpush1.bf16.msra.mxu0 %v2035
      %2058 = vmatprep.subr.bf16.mxu0 0
      %2059 = vmatpush1.bf16.msra.mxu0 %v2036
      %2060 = vmatprep.subr.bf16.mxu0 0
      %2061 = vmatpush1.bf16.msra.mxu0 %v2037
      %2062 = vmatprep.subr.bf16.mxu0 0
      %2063 = vmatpush1.bf16.msra.mxu0 0
      %2064 = vmatprep.subr.bf16.mxu0 0
      %2065 = vmatpush1.bf16.msra.mxu0 0
      %2066 = vmatprep.subr.bf16.mxu0 0
      %2067 = vmatpush1.bf16.msra.mxu0 0
      %2068 = vmatprep.subr.bf16.mxu0 0
      %2069 = vmatpush1.bf16.msra.mxu0 0
      %2070 = vmatprep.subr.bf16.mxu0 0
      %2071 = vmatpush1.bf16.msra.mxu0 0
      %2072 = vmatprep.subr.bf16.mxu0 0
      %2073 = vmatpush1.bf16.msra.mxu0 0
      %2074 = vmatprep.subr.bf16.mxu0 0
      %2075 = vmatpush1.bf16.msra.mxu0 0
      %2076 = vmatprep.subr.bf16.mxu0 0
      %2077 = vmatpush1.bf16.msra.mxu0 0
      %2078 = vmatprep.mubr.bf16.mxu0 0
      %2079 = vmatmul.mubr.bf16.gmra.mrb[0].mxu0 %v1966
      %v2080 = vpop.f32.mrb[0].mxu0
      %v2081 = vadd.f32 0.0, %v2080
      %v2082 = vpop.f32.mrb[0].mxu0
      %v2083 = vpop.f32.mrb[0].mxu0
      %v2084 = vadd.f32 0.0, %v2083
      %v2085 = vpop.f32.mrb[0].mxu0
      %2086 = vmatprep.mubr.bf16.mxu0 0
      %2087 = vmatmul.mubr.bf16.gmra.mrb[0].mxu0 %v1967
      %v2088 = vpop.f32.mrb[0].mxu0
      %v2089 = vadd.f32 0.0, %v2088
      %v2090 = vpop.f32.mrb[0].mxu0
      %v2091 = vpop.f32.mrb[0].mxu0
      %v2092 = vadd.f32 0.0, %v2091
      %v2093 = vpop.f32.mrb[0].mxu0
      %2094 = vmatprep.mubr.bf16.mxu0 0
      %2095 = vmatmul.mubr.bf16.gmra.mrb[0].mxu0 %v1968
      %v2096 = vpop.f32.mrb[0].mxu0
      %v2097 = vadd.f32 0.0, %v2096
      %v2098 = vpop.f32.mrb[0].mxu0
      %v2099 = vpop.f32.mrb[0].mxu0
      %v2100 = vadd.f32 0.0, %v2099
      %v2101 = vpop.f32.mrb[0].mxu0
      %2102 = vmatprep.mubr.bf16.mxu0 0
      %2103 = vmatmul.mubr.bf16.gmra.mrb[0].mxu0 %v1969
      %v2104 = vpop.f32.mrb[0].mxu0
      %v2105 = vadd.f32 0.0, %v2104
      %v2106 = vpop.f32.mrb[0].mxu0
      %v2107 = vpop.f32.mrb[0].mxu0
      %v2108 = vadd.f32 0.0, %v2107
      %v2109 = vpop.f32.mrb[0].mxu0
      %2110 = vmatprep.mubr.bf16.mxu0 0
      %2111 = vmatmul.mubr.bf16.gmra.mrb[0].mxu0 %v1970
      %v2112 = vpop.f32.mrb[0].mxu0
      %v2113 = vadd.f32 0.0, %v2112
      %v2114 = vpop.f32.mrb[0].mxu0
      %v2115 = vpop.f32.mrb[0].mxu0
      %v2116 = vadd.f32 0.0, %v2115
      %v2117 = vpop.f32.mrb[0].mxu0
      %2118 = vmatprep.mubr.bf16.mxu0 0
      %2119 = vmatmul.mubr.bf16.gmra.mrb[0].mxu0 %v1971
      %v2120 = vpop.f32.mrb[0].mxu0
      %v2121 = vadd.f32 0.0, %v2120
      %v2122 = vpop.f32.mrb[0].mxu0
      %v2123 = vpop.f32.mrb[0].mxu0
      %v2124 = vadd.f32 0.0, %v2123
      %v2125 = vpop.f32.mrb[0].mxu0
      %2126 = vmatprep.mubr.bf16.mxu0 0
      %2127 = vmatmul.mubr.bf16.gmra.mrb[0].mxu0 %v1972
      %v2128 = vpop.f32.mrb[0].mxu0
      %v2129 = vadd.f32 0.0, %v2128
      %v2130 = vpop.f32.mrb[0].mxu0
      %v2131 = vpop.f32.mrb[0].mxu0
      %v2132 = vadd.f32 0.0, %v2131
      %v2133 = vpop.f32.mrb[0].mxu0
      %2134 = vmatprep.mubr.bf16.mxu0 0
      %2135 = vmatmul.mubr.bf16.gmra.mrb[0].mxu0 %v1973
      %v2136 = vpop.f32.mrb[0].mxu0
      %v2137 = vadd.f32 0.0, %v2136
      %v2138 = vpop.f32.mrb[0].mxu0
      %v2139 = vpop.f32.mrb[0].mxu0
      %v2140 = vadd.f32 0.0, %v2139
      %v2141 = vpop.f32.mrb[0].mxu0
      %2142 = vmatprep.mubr.bf16.mxu0 0
      %2143 = vmatmul.mubr.bf16.gmra.mrb[0].mxu0 %v1974
      %v2144 = vpop.f32.mrb[0].mxu0
      %v2145 = vadd.f32 0.0, %v2144
      %v2146 = vpop.f32.mrb[0].mxu0
      %v2147 = vpop.f32.mrb[0].mxu0
      %v2148 = vadd.f32 0.0, %v2147
      %v2149 = vpop.f32.mrb[0].mxu0
      %2150 = vmatprep.mubr.bf16.mxu0 0
      %2151 = vmatmul.mubr.bf16.gmra.mrb[0].mxu0 %v1975
      %v2152 = vpop.f32.mrb[0].mxu0
      %v2153 = vadd.f32 0.0, %v2152
      %v2154 = vpop.f32.mrb[0].mxu0
      %v2155 = vpop.f32.mrb[0].mxu0
      %v2156 = vadd.f32 0.0, %v2155
      %v2157 = vpop.f32.mrb[0].mxu0
      %2158 = vmatprep.mubr.bf16.mxu0 0
      %2159 = vmatmul.mubr.bf16.gmra.mrb[0].mxu0 %v1976
      %v2160 = vpop.f32.mrb[0].mxu0
      %v2161 = vadd.f32 0.0, %v2160
      %v2162 = vpop.f32.mrb[0].mxu0
      %v2163 = vpop.f32.mrb[0].mxu0
      %v2164 = vadd.f32 0.0, %v2163
      %v2165 = vpop.f32.mrb[0].mxu0
      %2166 = vmatprep.mubr.bf16.mxu0 0
      %2167 = vmatmul.mubr.bf16.gmra.mrb[0].mxu0 %v1977
      %v2168 = vpop.f32.mrb[0].mxu0
      %v2169 = vadd.f32 0.0, %v2168
      %v2170 = vpop.f32.mrb[0].mxu0
      %v2171 = vpop.f32.mrb[0].mxu0
      %v2172 = vadd.f32 0.0, %v2171
      %v2173 = vpop.f32.mrb[0].mxu0
      %2174 = vmatprep.mubr.bf16.mxu0 0
      %2175 = vmatmul.mubr.bf16.gmra.mrb[0].mxu0 %v1978
      %v2176 = vpop.f32.mrb[0].mxu0
      %v2177 = vadd.f32 0.0, %v2176
      %v2178 = vpop.f32.mrb[0].mxu0
      %v2179 = vpop.f32.mrb[0].mxu0
      %v2180 = vadd.f32 0.0, %v2179
      %v2181 = vpop.f32.mrb[0].mxu0
      %2182 = vmatprep.mubr.bf16.mxu0 0
      %2183 = vmatmul.mubr.bf16.gmra.mrb[0].mxu0 %v1979
      %v2184 = vpop.f32.mrb[0].mxu0
      %v2185 = vadd.f32 0.0, %v2184
      %v2186 = vpop.f32.mrb[0].mxu0
      %v2187 = vpop.f32.mrb[0].mxu0
      %v2188 = vadd.f32 0.0, %v2187
      %v2189 = vpop.f32.mrb[0].mxu0
      %2190 = vmatprep.mubr.bf16.mxu0 0
      %2191 = vmatmul.mubr.bf16.gmra.mrb[0].mxu0 %v1980
      %v2192 = vpop.f32.mrb[0].mxu0
      %v2193 = vadd.f32 0.0, %v2192
      %v2194 = vpop.f32.mrb[0].mxu0
      %v2195 = vpop.f32.mrb[0].mxu0
      %v2196 = vadd.f32 0.0, %v2195
      %v2197 = vpop.f32.mrb[0].mxu0
      %2198 = vmatprep.mubr.bf16.mxu0 0
      %2199 = vmatmul.mubr.bf16.gmra.mrb[0].mxu0 %v1981
      %v2200 = vpop.f32.mrb[0].mxu0
      %v2201 = vadd.f32 0.0, %v2200
      %v2202 = vpop.f32.mrb[0].mxu0
      %v2203 = vpop.f32.mrb[0].mxu0
      %v2204 = vadd.f32 0.0, %v2203
      %v2205 = vpop.f32.mrb[0].mxu0
      %2206 = vdwg.mxu0
      %v2207 = vadd.f32 %v530, %v2081
      %v2208 = vadd.f32 %v530, %v2084
      %v2209 = vadd.f32 %v530, %v2089
      %v2210 = vadd.f32 %v530, %v2092
      %v2211 = vadd.f32 %v530, %v2097
      %v2212 = vadd.f32 %v530, %v2100
      %v2213 = vadd.f32 %v530, %v2105
      %v2214 = vadd.f32 %v530, %v2108
      %v2215 = vadd.f32 %v530, %v2113
      %v2216 = vadd.f32 %v530, %v2116
      %v2217 = vadd.f32 %v530, %v2121
      %v2218 = vadd.f32 %v530, %v2124
      %v2219 = vadd.f32 %v530, %v2129
      %v2220 = vadd.f32 %v530, %v2132
      %v2221 = vadd.f32 %v530, %v2137
      %v2222 = vadd.f32 %v530, %v2140
      %v2223 = vadd.f32 %v530, %v2145
      %v2224 = vadd.f32 %v530, %v2148
      %v2225 = vadd.f32 %v530, %v2153
      %v2226 = vadd.f32 %v530, %v2156
      %v2227 = vadd.f32 %v530, %v2161
      %v2228 = vadd.f32 %v530, %v2164
      %v2229 = vadd.f32 %v530, %v2169
      %v2230 = vadd.f32 %v530, %v2172
      %v2231 = vadd.f32 %v530, %v2177
      %v2232 = vadd.f32 %v530, %v2180
      %v2233 = vadd.f32 %v530, %v2185
      %v2234 = vadd.f32 %v530, %v2188
      %v2235 = vadd.f32 %v530, %v2193
      %v2236 = vadd.f32 %v530, %v2196
      %v2237 = vadd.f32 %v530, %v2201
      %v2238 = vadd.f32 %v530, %v2204
      %v2239 = vld [vmem:[%s1852] sm:$0xf]
      %v2240 = vld [vmem:[%s1852 + $0x4] sm:$0xf]
      %v2241 = vld [vmem:[%s1852 + $0x8] sm:$0x1]
      %v2242 = vld [vmem:[%s1852 + $0xc] sm:$0xf]
      %v2243 = vld [vmem:[%s1852 + $0x10] sm:$0xf]
      %v2244 = vld [vmem:[%s1852 + $0x14] sm:$0x1]
      %v2245 = vld [vmem:[%s1852 + $0x18] sm:$0xf]
      %v2246 = vld [vmem:[%s1852 + $0x1c] sm:$0xf]
      %v2247 = vld [vmem:[%s1852 + $0x20] sm:$0x1]
      %v2248 = vld [vmem:[%s1852 + $0x24] sm:$0xf]
      %v2249 = vld [vmem:[%s1852 + $0x28] sm:$0xf]
      %v2250 = vld [vmem:[%s1852 + $0x2c] sm:$0x1]
      %v2251 = vld [vmem:[%s1852 + $0x30] sm:$0xf]
      %v2252 = vld [vmem:[%s1852 + $0x34] sm:$0xf]
      %v2253 = vld [vmem:[%s1852 + $0x38] sm:$0x1]
      %v2254 = vld [vmem:[%s1852 + $0x3c] sm:$0xf]
      %v2255 = vld [vmem:[%s1852 + $0x40] sm:$0xf]
      %v2256 = vld [vmem:[%s1852 + $0x44] sm:$0x1]
      %v2257 = vld [vmem:[%s1852 + $0x48] sm:$0xf]
      %v2258 = vld [vmem:[%s1852 + $0x4c] sm:$0xf]
      %v2259 = vld [vmem:[%s1852 + $0x50] sm:$0x1]
      %v2260 = vld [vmem:[%s1852 + $0x54] sm:$0xf]
      %v2261 = vld [vmem:[%s1852 + $0x58] sm:$0xf]
      %v2262 = vld [vmem:[%s1852 + $0x5c] sm:$0x1]
      %v2263 = vld [vmem:[%s1852 + $0x60] sm:$0xf]
      %v2264 = vld [vmem:[%s1852 + $0x64] sm:$0xf]
      %v2265 = vld [vmem:[%s1852 + $0x68] sm:$0x1]
      %v2266 = vld [vmem:[%s1852 + $0x6c] sm:$0xf]
      %v2267 = vld [vmem:[%s1852 + $0x70] sm:$0xf]
      %v2268 = vld [vmem:[%s1852 + $0x74] sm:$0x1]
      %v2269 = vld [vmem:[%s1852 + $0x78] sm:$0xf]
      %v2270 = vld [vmem:[%s1852 + $0x7c] sm:$0xf]
      %v2271 = vld [vmem:[%s1852 + $0x80] sm:$0x1]
      %v2272 = vld [vmem:[%s1852 + $0x84] sm:$0xf]
      %v2273 = vld [vmem:[%s1852 + $0x88] sm:$0xf]
      %v2274 = vld [vmem:[%s1852 + $0x8c] sm:$0x1]
      %v2275 = vld [vmem:[%s1852 + $0x90] sm:$0xf]
      %v2276 = vld [vmem:[%s1852 + $0x94] sm:$0xf]
      %v2277 = vld [vmem:[%s1852 + $0x98] sm:$0x1]
      %v2278 = vld [vmem:[%s1852 + $0x9c] sm:$0xf]
      %v2279 = vld [vmem:[%s1852 + $0xa0] sm:$0xf]
      %v2280 = vld [vmem:[%s1852 + $0xa4] sm:$0x1]
      %v2281 = vld [vmem:[%s1852 + $0xa8] sm:$0xf]
      %v2282 = vld [vmem:[%s1852 + $0xac] sm:$0xf]
      %v2283 = vld [vmem:[%s1852 + $0xb0] sm:$0x1]
      %v2284 = vld [vmem:[%s1852 + $0xb4] sm:$0xf]
      %v2285 = vld [vmem:[%s1852 + $0xb8] sm:$0xf]
      %v2286 = vld [vmem:[%s1852 + $0xbc] sm:$0x1]
      %v2288 = vshrl.u32 %v2239, 16
      %v2290 = vrot.slane %v2288, 4
      %v2291 = vshll.u32 %v2239, 16
      %v2293 = vrot.slane %v2291, 5
      %v2294 = vor.u32 %v2290, %v2293
      %v2295 = vrot.slane %v2294, 4
      %v2297 = vshll.u32 %v2240, 16
      %v2299 = vrot.slane %v2297, 5
      %v2300 = vsel %vm614, %v2295, %v2299
      %v2301 = vshrl.u32 %v2240, 16
      %v2303 = vrot.slane %v2301, 4
      %v2304 = vor.u32 %v2303, %v2299
      %v2305 = vrot.slane %v2304, 4
      %v2307 = vshll.u32 %v2241, 16
      %v2309 = vrot.slane %v2307, 5
      %v2310 = vsel %vm614, %v2305, %v2309
      %v2312 = vshrl.u32 %v2242, 16
      %v2314 = vrot.slane %v2312, 4
      %v2315 = vshll.u32 %v2242, 16
      %v2317 = vrot.slane %v2315, 5
      %v2318 = vor.u32 %v2314, %v2317
      %v2319 = vrot.slane %v2318, 4
      %v2321 = vshll.u32 %v2243, 16
      %v2323 = vrot.slane %v2321, 5
      %v2324 = vsel %vm614, %v2319, %v2323
      %v2325 = vshrl.u32 %v2243, 16
      %v2327 = vrot.slane %v2325, 4
      %v2328 = vor.u32 %v2327, %v2323
      %v2329 = vrot.slane %v2328, 4
      %v2331 = vshll.u32 %v2244, 16
      %v2333 = vrot.slane %v2331, 5
      %v2334 = vsel %vm614, %v2329, %v2333
      %v2336 = vshrl.u32 %v2245, 16
      %v2338 = vrot.slane %v2336, 4
      %v2339 = vshll.u32 %v2245, 16
      %v2341 = vrot.slane %v2339, 5
      %v2342 = vor.u32 %v2338, %v2341
      %v2343 = vrot.slane %v2342, 4
      %v2345 = vshll.u32 %v2246, 16
      %v2347 = vrot.slane %v2345, 5
      %v2348 = vsel %vm614, %v2343, %v2347
      %v2349 = vshrl.u32 %v2246, 16
      %v2351 = vrot.slane %v2349, 4
      %v2352 = vor.u32 %v2351, %v2347
      %v2353 = vrot.slane %v2352, 4
      %v2355 = vshll.u32 %v2247, 16
      %v2357 = vrot.slane %v2355, 5
      %v2358 = vsel %vm614, %v2353, %v2357
      %v2360 = vshrl.u32 %v2248, 16
      %v2362 = vrot.slane %v2360, 4
      %v2363 = vshll.u32 %v2248, 16
      %v2365 = vrot.slane %v2363, 5
      %v2366 = vor.u32 %v2362, %v2365
      %v2367 = vrot.slane %v2366, 4
      %v2369 = vshll.u32 %v2249, 16
      %v2371 = vrot.slane %v2369, 5
      %v2372 = vsel %vm614, %v2367, %v2371
      %v2373 = vshrl.u32 %v2249, 16
      %v2375 = vrot.slane %v2373, 4
      %v2376 = vor.u32 %v2375, %v2371
      %v2377 = vrot.slane %v2376, 4
      %v2379 = vshll.u32 %v2250, 16
      %v2381 = vrot.slane %v2379, 5
      %v2382 = vsel %vm614, %v2377, %v2381
      %v2384 = vshrl.u32 %v2251, 16
      %v2386 = vrot.slane %v2384, 4
      %v2387 = vshll.u32 %v2251, 16
      %v2389 = vrot.slane %v2387, 5
      %v2390 = vor.u32 %v2386, %v2389
      %v2391 = vrot.slane %v2390, 4
      %v2393 = vshll.u32 %v2252, 16
      %v2395 = vrot.slane %v2393, 5
      %v2396 = vsel %vm614, %v2391, %v2395
      %v2397 = vshrl.u32 %v2252, 16
      %v2399 = vrot.slane %v2397, 4
      %v2400 = vor.u32 %v2399, %v2395
      %v2401 = vrot.slane %v2400, 4
      %v2403 = vshll.u32 %v2253, 16
      %v2405 = vrot.slane %v2403, 5
      %v2406 = vsel %vm614, %v2401, %v2405
      %v2408 = vshrl.u32 %v2254, 16
      %v2410 = vrot.slane %v2408, 4
      %v2411 = vshll.u32 %v2254, 16
      %v2413 = vrot.slane %v2411, 5
      %v2414 = vor.u32 %v2410, %v2413
      %v2415 = vrot.slane %v2414, 4
      %v2417 = vshll.u32 %v2255, 16
      %v2419 = vrot.slane %v2417, 5
      %v2420 = vsel %vm614, %v2415, %v2419
      %v2421 = vshrl.u32 %v2255, 16
      %v2423 = vrot.slane %v2421, 4
      %v2424 = vor.u32 %v2423, %v2419
      %v2425 = vrot.slane %v2424, 4
      %v2427 = vshll.u32 %v2256, 16
      %v2429 = vrot.slane %v2427, 5
      %v2430 = vsel %vm614, %v2425, %v2429
      %v2432 = vshrl.u32 %v2257, 16
      %v2434 = vrot.slane %v2432, 4
      %v2435 = vshll.u32 %v2257, 16
      %v2437 = vrot.slane %v2435, 5
      %v2438 = vor.u32 %v2434, %v2437
      %v2439 = vrot.slane %v2438, 4
      %v2441 = vshll.u32 %v2258, 16
      %v2443 = vrot.slane %v2441, 5
      %v2444 = vsel %vm614, %v2439, %v2443
      %v2445 = vshrl.u32 %v2258, 16
      %v2447 = vrot.slane %v2445, 4
      %v2448 = vor.u32 %v2447, %v2443
      %v2449 = vrot.slane %v2448, 4
      %v2451 = vshll.u32 %v2259, 16
      %v2453 = vrot.slane %v2451, 5
      %v2454 = vsel %vm614, %v2449, %v2453
      %v2456 = vshrl.u32 %v2260, 16
      %v2458 = vrot.slane %v2456, 4
      %v2459 = vshll.u32 %v2260, 16
      %v2461 = vrot.slane %v2459, 5
      %v2462 = vor.u32 %v2458, %v2461
      %v2463 = vrot.slane %v2462, 4
      %v2465 = vshll.u32 %v2261, 16
      %v2467 = vrot.slane %v2465, 5
      %v2468 = vsel %vm614, %v2463, %v2467
      %v2469 = vshrl.u32 %v2261, 16
      %v2471 = vrot.slane %v2469, 4
      %v2472 = vor.u32 %v2471, %v2467
      %v2473 = vrot.slane %v2472, 4
      %v2475 = vshll.u32 %v2262, 16
      %v2477 = vrot.slane %v2475, 5
      %v2478 = vsel %vm614, %v2473, %v2477
      %v2480 = vshrl.u32 %v2263, 16
      %v2482 = vrot.slane %v2480, 4
      %v2483 = vshll.u32 %v2263, 16
      %v2485 = vrot.slane %v2483, 5
      %v2486 = vor.u32 %v2482, %v2485
      %v2487 = vrot.slane %v2486, 4
      %v2489 = vshll.u32 %v2264, 16
      %v2491 = vrot.slane %v2489, 5
      %v2492 = vsel %vm614, %v2487, %v2491
      %v2493 = vshrl.u32 %v2264, 16
      %v2495 = vrot.slane %v2493, 4
      %v2496 = vor.u32 %v2495, %v2491
      %v2497 = vrot.slane %v2496, 4
      %v2499 = vshll.u32 %v2265, 16
      %v2501 = vrot.slane %v2499, 5
      %v2502 = vsel %vm614, %v2497, %v2501
      %v2504 = vshrl.u32 %v2266, 16
      %v2506 = vrot.slane %v2504, 4
      %v2507 = vshll.u32 %v2266, 16
      %v2509 = vrot.slane %v2507, 5
      %v2510 = vor.u32 %v2506, %v2509
      %v2511 = vrot.slane %v2510, 4
      %v2513 = vshll.u32 %v2267, 16
      %v2515 = vrot.slane %v2513, 5
      %v2516 = vsel %vm614, %v2511, %v2515
      %v2517 = vshrl.u32 %v2267, 16
      %v2519 = vrot.slane %v2517, 4
      %v2520 = vor.u32 %v2519, %v2515
      %v2521 = vrot.slane %v2520, 4
      %v2523 = vshll.u32 %v2268, 16
      %v2525 = vrot.slane %v2523, 5
      %v2526 = vsel %vm614, %v2521, %v2525
      %v2528 = vshrl.u32 %v2269, 16
      %v2530 = vrot.slane %v2528, 4
      %v2531 = vshll.u32 %v2269, 16
      %v2533 = vrot.slane %v2531, 5
      %v2534 = vor.u32 %v2530, %v2533
      %v2535 = vrot.slane %v2534, 4
      %v2537 = vshll.u32 %v2270, 16
      %v2539 = vrot.slane %v2537, 5
      %v2540 = vsel %vm614, %v2535, %v2539
      %v2541 = vshrl.u32 %v2270, 16
      %v2543 = vrot.slane %v2541, 4
      %v2544 = vor.u32 %v2543, %v2539
      %v2545 = vrot.slane %v2544, 4
      %v2547 = vshll.u32 %v2271, 16
      %v2549 = vrot.slane %v2547, 5
      %v2550 = vsel %vm614, %v2545, %v2549
      %v2552 = vshrl.u32 %v2272, 16
      %v2554 = vrot.slane %v2552, 4
      %v2555 = vshll.u32 %v2272, 16
      %v2557 = vrot.slane %v2555, 5
      %v2558 = vor.u32 %v2554, %v2557
      %v2559 = vrot.slane %v2558, 4
      %v2561 = vshll.u32 %v2273, 16
      %v2563 = vrot.slane %v2561, 5
      %v2564 = vsel %vm614, %v2559, %v2563
      %v2565 = vshrl.u32 %v2273, 16
      %v2567 = vrot.slane %v2565, 4
      %v2568 = vor.u32 %v2567, %v2563
      %v2569 = vrot.slane %v2568, 4
      %v2571 = vshll.u32 %v2274, 16
      %v2573 = vrot.slane %v2571, 5
      %v2574 = vsel %vm614, %v2569, %v2573
      %v2576 = vshrl.u32 %v2275, 16
      %v2578 = vrot.slane %v2576, 4
      %v2579 = vshll.u32 %v2275, 16
      %v2581 = vrot.slane %v2579, 5
      %v2582 = vor.u32 %v2578, %v2581
      %v2583 = vrot.slane %v2582, 4
      %v2585 = vshll.u32 %v2276, 16
      %v2587 = vrot.slane %v2585, 5
      %v2588 = vsel %vm614, %v2583, %v2587
      %v2589 = vshrl.u32 %v2276, 16
      %v2591 = vrot.slane %v2589, 4
      %v2592 = vor.u32 %v2591, %v2587
      %v2593 = vrot.slane %v2592, 4
      %v2595 = vshll.u32 %v2277, 16
      %v2597 = vrot.slane %v2595, 5
      %v2598 = vsel %vm614, %v2593, %v2597
      %v2600 = vshrl.u32 %v2278, 16
      %v2602 = vrot.slane %v2600, 4
      %v2603 = vshll.u32 %v2278, 16
      %v2605 = vrot.slane %v2603, 5
      %v2606 = vor.u32 %v2602, %v2605
      %v2607 = vrot.slane %v2606, 4
      %v2609 = vshll.u32 %v2279, 16
      %v2611 = vrot.slane %v2609, 5
      %v2612 = vsel %vm614, %v2607, %v2611
      %v2613 = vshrl.u32 %v2279, 16
      %v2615 = vrot.slane %v2613, 4
      %v2616 = vor.u32 %v2615, %v2611
      %v2617 = vrot.slane %v2616, 4
      %v2619 = vshll.u32 %v2280, 16
      %v2621 = vrot.slane %v2619, 5
      %v2622 = vsel %vm614, %v2617, %v2621
      %v2624 = vshrl.u32 %v2281, 16
      %v2626 = vrot.slane %v2624, 4
      %v2627 = vshll.u32 %v2281, 16
      %v2629 = vrot.slane %v2627, 5
      %v2630 = vor.u32 %v2626, %v2629
      %v2631 = vrot.slane %v2630, 4
      %v2633 = vshll.u32 %v2282, 16
      %v2635 = vrot.slane %v2633, 5
      %v2636 = vsel %vm614, %v2631, %v2635
      %v2637 = vshrl.u32 %v2282, 16
      %v2639 = vrot.slane %v2637, 4
      %v2640 = vor.u32 %v2639, %v2635
      %v2641 = vrot.slane %v2640, 4
      %v2643 = vshll.u32 %v2283, 16
      %v2645 = vrot.slane %v2643, 5
      %v2646 = vsel %vm614, %v2641, %v2645
      %v2648 = vshrl.u32 %v2284, 16
      %v2650 = vrot.slane %v2648, 4
      %v2651 = vshll.u32 %v2284, 16
      %v2653 = vrot.slane %v2651, 5
      %v2654 = vor.u32 %v2650, %v2653
      %v2655 = vrot.slane %v2654, 4
      %v2657 = vshll.u32 %v2285, 16
      %v2659 = vrot.slane %v2657, 5
      %v2660 = vsel %vm614, %v2655, %v2659
      %v2661 = vshrl.u32 %v2285, 16
      %v2663 = vrot.slane %v2661, 4
      %v2664 = vor.u32 %v2663, %v2659
      %v2665 = vrot.slane %v2664, 4
      %v2667 = vshll.u32 %v2286, 16
      %v2669 = vrot.slane %v2667, 5
      %v2670 = vsel %vm614, %v2665, %v2669
      %v2671 = vld [vmem:[%s1885 + $0x40] sm:$0xf]
      %v2672 = vld [vmem:[%s1885 + $0x44] sm:$0xf]
      %v2673 = vld [vmem:[%s1885 + $0x48] sm:$0xf]
      %v2674 = vld [vmem:[%s1885 + $0x4c] sm:$0xf]
      %v2675 = vld [vmem:[%s1885 + $0x50] sm:$0xf]
      %v2676 = vld [vmem:[%s1885 + $0x54] sm:$0xf]
      %v2677 = vld [vmem:[%s1885 + $0x58] sm:$0xf]
      %v2678 = vld [vmem:[%s1885 + $0x5c] sm:$0xf]
      %v2679 = vld [vmem:[%s1885 + $0x60] sm:$0xf]
      %v2680 = vld [vmem:[%s1885 + $0x64] sm:$0xf]
      %v2681 = vld [vmem:[%s1885 + $0x68] sm:$0xf]
      %v2682 = vld [vmem:[%s1885 + $0x6c] sm:$0xf]
      %v2683 = vld [vmem:[%s1885 + $0x70] sm:$0xf]
      %v2684 = vld [vmem:[%s1885 + $0x74] sm:$0xf]
      %v2685 = vld [vmem:[%s1885 + $0x78] sm:$0xf]
      %v2686 = vld [vmem:[%s1885 + $0x7c] sm:$0xf]
      %v2687 = vunpack.c.l.b16 %v2300
      %v2688 = vunpack.c.l.b16 %v2310
      %v2689 = vunpack.c.l.b16 %v2324
      %v2690 = vunpack.c.l.b16 %v2334
      %v2691 = vunpack.c.l.b16 %v2348
      %v2692 = vunpack.c.l.b16 %v2358
      %v2693 = vunpack.c.l.b16 %v2372
      %v2694 = vunpack.c.l.b16 %v2382
      %v2695 = vunpack.c.l.b16 %v2396
      %v2696 = vunpack.c.l.b16 %v2406
      %v2697 = vunpack.c.l.b16 %v2420
      %v2698 = vunpack.c.l.b16 %v2430
      %v2699 = vunpack.c.l.b16 %v2444
      %v2700 = vunpack.c.l.b16 %v2454
      %v2701 = vunpack.c.l.b16 %v2468
      %v2702 = vunpack.c.l.b16 %v2478
      %v2703 = vunpack.c.l.b16 %v2492
      %v2704 = vunpack.c.l.b16 %v2502
      %v2705 = vunpack.c.l.b16 %v2516
      %v2706 = vunpack.c.l.b16 %v2526
      %v2707 = vunpack.c.l.b16 %v2540
      %v2708 = vunpack.c.l.b16 %v2550
      %v2709 = vunpack.c.l.b16 %v2564
      %v2710 = vunpack.c.l.b16 %v2574
      %v2711 = vunpack.c.l.b16 %v2588
      %v2712 = vunpack.c.l.b16 %v2598
      %v2713 = vunpack.c.l.b16 %v2612
      %v2714 = vunpack.c.l.b16 %v2622
      %v2715 = vunpack.c.l.b16 %v2636
      %v2716 = vunpack.c.l.b16 %v2646
      %v2717 = vunpack.c.l.b16 %v2660
      %v2718 = vunpack.c.l.b16 %v2670
      %v2719 = vpack.c.b16 %v2688, %v2687
      %v2720 = vpack.c.b16 %v2690, %v2689
      %v2721 = vpack.c.b16 %v2692, %v2691
      %v2722 = vpack.c.b16 %v2694, %v2693
      %v2723 = vpack.c.b16 %v2696, %v2695
      %v2724 = vpack.c.b16 %v2698, %v2697
      %v2725 = vpack.c.b16 %v2700, %v2699
      %v2726 = vpack.c.b16 %v2702, %v2701
      %v2727 = vpack.c.b16 %v2704, %v2703
      %v2728 = vpack.c.b16 %v2706, %v2705
      %v2729 = vpack.c.b16 %v2708, %v2707
      %v2730 = vpack.c.b16 %v2710, %v2709
      %v2731 = vpack.c.b16 %v2712, %v2711
      %v2732 = vpack.c.b16 %v2714, %v2713
      %v2733 = vpack.c.b16 %v2716, %v2715
      %v2734 = vpack.c.b16 %v2718, %v2717
      %v2767 = vunpack.c.l.b16 %v2671
      %v2768 = vunpack.c.l.b16 %v2672
      %v2769 = vunpack.c.l.b16 %v2673
      %v2770 = vunpack.c.l.b16 %v2674
      %v2771 = vunpack.c.l.b16 %v2675
      %v2772 = vunpack.c.l.b16 %v2676
      %v2773 = vunpack.c.l.b16 %v2677
      %v2774 = vunpack.c.l.b16 %v2678
      %v2775 = vunpack.c.l.b16 %v2679
      %v2776 = vunpack.c.l.b16 %v2680
      %v2777 = vunpack.c.l.b16 %v2681
      %v2778 = vunpack.c.l.b16 %v2682
      %v2779 = vunpack.c.l.b16 %v2683
      %v2780 = vunpack.c.l.b16 %v2684
      %v2781 = vunpack.c.l.b16 %v2685
      %v2782 = vunpack.c.l.b16 %v2686
      %v2783 = vpack.c.b16 %v2768, %v2767
      %v2784 = vpack.c.b16 %v2770, %v2769
      %v2785 = vpack.c.b16 %v2772, %v2771
      %v2786 = vpack.c.b16 %v2774, %v2773
      %v2787 = vpack.c.b16 %v2776, %v2775
      %v2788 = vpack.c.b16 %v2778, %v2777
      %v2789 = vpack.c.b16 %v2780, %v2779
      %v2790 = vpack.c.b16 %v2782, %v2781
      %2799 = vmatprep.subr.bf16.mxu0 0
      %2800 = vmatpush1.bf16.msra.mxu0 %v2783
      %2801 = vmatprep.subr.bf16.mxu0 0
      %2802 = vmatpush1.bf16.msra.mxu0 %v2784
      %2803 = vmatprep.subr.bf16.mxu0 0
      %2804 = vmatpush1.bf16.msra.mxu0 %v2785
      %2805 = vmatprep.subr.bf16.mxu0 0
      %2806 = vmatpush1.bf16.msra.mxu0 %v2786
      %2807 = vmatprep.subr.bf16.mxu0 0
      %2808 = vmatpush1.bf16.msra.mxu0 %v2787
      %2809 = vmatprep.subr.bf16.mxu0 0
      %2810 = vmatpush1.bf16.msra.mxu0 %v2788
      %2811 = vmatprep.subr.bf16.mxu0 0
      %2812 = vmatpush1.bf16.msra.mxu0 %v2789
      %2813 = vmatprep.subr.bf16.mxu0 0
      %2814 = vmatpush1.bf16.msra.mxu0 %v2790
      %2815 = vmatprep.subr.bf16.mxu0 0
      %2816 = vmatpush1.bf16.msra.mxu0 0
      %2817 = vmatprep.subr.bf16.mxu0 0
      %2818 = vmatpush1.bf16.msra.mxu0 0
      %2819 = vmatprep.subr.bf16.mxu0 0
      %2820 = vmatpush1.bf16.msra.mxu0 0
      %2821 = vmatprep.subr.bf16.mxu0 0
      %2822 = vmatpush1.bf16.msra.mxu0 0
      %2823 = vmatprep.subr.bf16.mxu0 0
      %2824 = vmatpush1.bf16.msra.mxu0 0
      %2825 = vmatprep.subr.bf16.mxu0 0
      %2826 = vmatpush1.bf16.msra.mxu0 0
      %2827 = vmatprep.subr.bf16.mxu0 0
      %2828 = vmatpush1.bf16.msra.mxu0 0
      %2829 = vmatprep.subr.bf16.mxu0 0
      %2830 = vmatpush1.bf16.msra.mxu0 0
      %2831 = vmatprep.mubr.bf16.mxu0 0
      %2832 = vmatmul.mubr.bf16.gmra.mrb[0].mxu0 %v2719
      %v2833 = vpop.f32.mrb[0].mxu0
      %v2834 = vadd.f32 0.0, %v2833
      %v2835 = vpop.f32.mrb[0].mxu0
      %v2836 = vpop.f32.mrb[0].mxu0
      %v2837 = vadd.f32 0.0, %v2836
      %v2838 = vpop.f32.mrb[0].mxu0
      %2839 = vmatprep.mubr.bf16.mxu0 0
      %2840 = vmatmul.mubr.bf16.gmra.mrb[0].mxu0 %v2720
      %v2841 = vpop.f32.mrb[0].mxu0
      %v2842 = vadd.f32 0.0, %v2841
      %v2843 = vpop.f32.mrb[0].mxu0
      %v2844 = vpop.f32.mrb[0].mxu0
      %v2845 = vadd.f32 0.0, %v2844
      %v2846 = vpop.f32.mrb[0].mxu0
      %2847 = vmatprep.mubr.bf16.mxu0 0
      %2848 = vmatmul.mubr.bf16.gmra.mrb[0].mxu0 %v2721
      %v2849 = vpop.f32.mrb[0].mxu0
      %v2850 = vadd.f32 0.0, %v2849
      %v2851 = vpop.f32.mrb[0].mxu0
      %v2852 = vpop.f32.mrb[0].mxu0
      %v2853 = vadd.f32 0.0, %v2852
      %v2854 = vpop.f32.mrb[0].mxu0
      %2855 = vmatprep.mubr.bf16.mxu0 0
      %2856 = vmatmul.mubr.bf16.gmra.mrb[0].mxu0 %v2722
      %v2857 = vpop.f32.mrb[0].mxu0
      %v2858 = vadd.f32 0.0, %v2857
      %v2859 = vpop.f32.mrb[0].mxu0
      %v2860 = vpop.f32.mrb[0].mxu0
      %v2861 = vadd.f32 0.0, %v2860
      %v2862 = vpop.f32.mrb[0].mxu0
      %2863 = vmatprep.mubr.bf16.mxu0 0
      %2864 = vmatmul.mubr.bf16.gmra.mrb[0].mxu0 %v2723
      %v2865 = vpop.f32.mrb[0].mxu0
      %v2866 = vadd.f32 0.0, %v2865
      %v2867 = vpop.f32.mrb[0].mxu0
      %v2868 = vpop.f32.mrb[0].mxu0
      %v2869 = vadd.f32 0.0, %v2868
      %v2870 = vpop.f32.mrb[0].mxu0
      %2871 = vmatprep.mubr.bf16.mxu0 0
      %2872 = vmatmul.mubr.bf16.gmra.mrb[0].mxu0 %v2724
      %v2873 = vpop.f32.mrb[0].mxu0
      %v2874 = vadd.f32 0.0, %v2873
      %v2875 = vpop.f32.mrb[0].mxu0
      %v2876 = vpop.f32.mrb[0].mxu0
      %v2877 = vadd.f32 0.0, %v2876
      %v2878 = vpop.f32.mrb[0].mxu0
      %2879 = vmatprep.mubr.bf16.mxu0 0
      %2880 = vmatmul.mubr.bf16.gmra.mrb[0].mxu0 %v2725
      %v2881 = vpop.f32.mrb[0].mxu0
      %v2882 = vadd.f32 0.0, %v2881
      %v2883 = vpop.f32.mrb[0].mxu0
      %v2884 = vpop.f32.mrb[0].mxu0
      %v2885 = vadd.f32 0.0, %v2884
      %v2886 = vpop.f32.mrb[0].mxu0
      %2887 = vmatprep.mubr.bf16.mxu0 0
      %2888 = vmatmul.mubr.bf16.gmra.mrb[0].mxu0 %v2726
      %v2889 = vpop.f32.mrb[0].mxu0
      %v2890 = vadd.f32 0.0, %v2889
      %v2891 = vpop.f32.mrb[0].mxu0
      %v2892 = vpop.f32.mrb[0].mxu0
      %v2893 = vadd.f32 0.0, %v2892
      %v2894 = vpop.f32.mrb[0].mxu0
      %2895 = vmatprep.mubr.bf16.mxu0 0
      %2896 = vmatmul.mubr.bf16.gmra.mrb[0].mxu0 %v2727
      %v2897 = vpop.f32.mrb[0].mxu0
      %v2898 = vadd.f32 0.0, %v2897
      %v2899 = vpop.f32.mrb[0].mxu0
      %v2900 = vpop.f32.mrb[0].mxu0
      %v2901 = vadd.f32 0.0, %v2900
      %v2902 = vpop.f32.mrb[0].mxu0
      %2903 = vmatprep.mubr.bf16.mxu0 0
      %2904 = vmatmul.mubr.bf16.gmra.mrb[0].mxu0 %v2728
      %v2905 = vpop.f32.mrb[0].mxu0
      %v2906 = vadd.f32 0.0, %v2905
      %v2907 = vpop.f32.mrb[0].mxu0
      %v2908 = vpop.f32.mrb[0].mxu0
      %v2909 = vadd.f32 0.0, %v2908
      %v2910 = vpop.f32.mrb[0].mxu0
      %2911 = vmatprep.mubr.bf16.mxu0 0
      %2912 = vmatmul.mubr.bf16.gmra.mrb[0].mxu0 %v2729
      %v2913 = vpop.f32.mrb[0].mxu0
      %v2914 = vadd.f32 0.0, %v2913
      %v2915 = vpop.f32.mrb[0].mxu0
      %v2916 = vpop.f32.mrb[0].mxu0
      %v2917 = vadd.f32 0.0, %v2916
      %v2918 = vpop.f32.mrb[0].mxu0
      %2919 = vmatprep.mubr.bf16.mxu0 0
      %2920 = vmatmul.mubr.bf16.gmra.mrb[0].mxu0 %v2730
      %v2921 = vpop.f32.mrb[0].mxu0
      %v2922 = vadd.f32 0.0, %v2921
      %v2923 = vpop.f32.mrb[0].mxu0
      %v2924 = vpop.f32.mrb[0].mxu0
      %v2925 = vadd.f32 0.0, %v2924
      %v2926 = vpop.f32.mrb[0].mxu0
      %2927 = vmatprep.mubr.bf16.mxu0 0
      %2928 = vmatmul.mubr.bf16.gmra.mrb[0].mxu0 %v2731
      %v2929 = vpop.f32.mrb[0].mxu0
      %v2930 = vadd.f32 0.0, %v2929
      %v2931 = vpop.f32.mrb[0].mxu0
      %v2932 = vpop.f32.mrb[0].mxu0
      %v2933 = vadd.f32 0.0, %v2932
      %v2934 = vpop.f32.mrb[0].mxu0
      %2935 = vmatprep.mubr.bf16.mxu0 0
      %2936 = vmatmul.mubr.bf16.gmra.mrb[0].mxu0 %v2732
      %v2937 = vpop.f32.mrb[0].mxu0
      %v2938 = vadd.f32 0.0, %v2937
      %v2939 = vpop.f32.mrb[0].mxu0
      %v2940 = vpop.f32.mrb[0].mxu0
      %v2941 = vadd.f32 0.0, %v2940
      %v2942 = vpop.f32.mrb[0].mxu0
      %2943 = vmatprep.mubr.bf16.mxu0 0
      %2944 = vmatmul.mubr.bf16.gmra.mrb[0].mxu0 %v2733
      %v2945 = vpop.f32.mrb[0].mxu0
      %v2946 = vadd.f32 0.0, %v2945
      %v2947 = vpop.f32.mrb[0].mxu0
      %v2948 = vpop.f32.mrb[0].mxu0
      %v2949 = vadd.f32 0.0, %v2948
      %v2950 = vpop.f32.mrb[0].mxu0
      %2951 = vmatprep.mubr.bf16.mxu0 0
      %2952 = vmatmul.mubr.bf16.gmra.mrb[0].mxu0 %v2734
      %v2953 = vpop.f32.mrb[0].mxu0
      %v2954 = vadd.f32 0.0, %v2953
      %v2955 = vpop.f32.mrb[0].mxu0
      %v2956 = vpop.f32.mrb[0].mxu0
      %v2957 = vadd.f32 0.0, %v2956
      %v2958 = vpop.f32.mrb[0].mxu0
      %2959 = vdwg.mxu0
      %v2960 = vadd.f32 %v2207, %v2834
      %v2961 = vadd.f32 %v2208, %v2837
      %v2962 = vadd.f32 %v2209, %v2842
      %v2963 = vadd.f32 %v2210, %v2845
      %v2964 = vadd.f32 %v2211, %v2850
      %v2965 = vadd.f32 %v2212, %v2853
      %v2966 = vadd.f32 %v2213, %v2858
      %v2967 = vadd.f32 %v2214, %v2861
      %v2968 = vadd.f32 %v2215, %v2866
      %v2969 = vadd.f32 %v2216, %v2869
      %v2970 = vadd.f32 %v2217, %v2874
      %v2971 = vadd.f32 %v2218, %v2877
      %v2972 = vadd.f32 %v2219, %v2882
      %v2973 = vadd.f32 %v2220, %v2885
      %v2974 = vadd.f32 %v2221, %v2890
      %v2975 = vadd.f32 %v2222, %v2893
      %v2976 = vadd.f32 %v2223, %v2898
      %v2977 = vadd.f32 %v2224, %v2901
      %v2978 = vadd.f32 %v2225, %v2906
      %v2979 = vadd.f32 %v2226, %v2909
      %v2980 = vadd.f32 %v2227, %v2914
      %v2981 = vadd.f32 %v2228, %v2917
      %v2982 = vadd.f32 %v2229, %v2922
      %v2983 = vadd.f32 %v2230, %v2925
      %v2984 = vadd.f32 %v2231, %v2930
      %v2985 = vadd.f32 %v2232, %v2933
      %v2986 = vadd.f32 %v2233, %v2938
      %v2987 = vadd.f32 %v2234, %v2941
      %v2988 = vadd.f32 %v2235, %v2946
      %v2989 = vadd.f32 %v2236, %v2949
      %v2990 = vadd.f32 %v2237, %v2954
      %v2991 = vadd.f32 %v2238, %v2957
      %v2992 = vld [vmem:[%s1852] sm:$0xe]
      %v2993 = vld [vmem:[%s1852 + $0xc] sm:$0xe]
      %v2994 = vld [vmem:[%s1852 + $0x18] sm:$0xe]
      %v2995 = vld [vmem:[%s1852 + $0x24] sm:$0xe]
      %v2996 = vld [vmem:[%s1852 + $0x30] sm:$0xe]
      %v2997 = vld [vmem:[%s1852 + $0x3c] sm:$0xe]
      %v2998 = vld [vmem:[%s1852 + $0x48] sm:$0xe]
      %v2999 = vld [vmem:[%s1852 + $0x54] sm:$0xe]
      %v3000 = vld [vmem:[%s1852 + $0x60] sm:$0xe]
      %v3001 = vld [vmem:[%s1852 + $0x6c] sm:$0xe]
      %v3002 = vld [vmem:[%s1852 + $0x78] sm:$0xe]
      %v3003 = vld [vmem:[%s1852 + $0x84] sm:$0xe]
      %v3004 = vld [vmem:[%s1852 + $0x90] sm:$0xe]
      %v3005 = vld [vmem:[%s1852 + $0x9c] sm:$0xe]
      %v3006 = vld [vmem:[%s1852 + $0xa8] sm:$0xe]
      %v3007 = vld [vmem:[%s1852 + $0xb4] sm:$0xe]
      %v3056 = vrot.slane %v2992, 5
      %v3057 = vrot.slane %v3056, 4
      %v3058 = vrot.slane %v2240, 5
      %v3059 = vsel %vm1386, %v3057, %v3058
      %v3060 = vrot.slane %v3058, 4
      %v3061 = vrot.slane %v2241, 5
      %v3062 = vsel %vm1386, %v3060, %v3061
      %v3063 = vrot.slane %v2993, 5
      %v3064 = vrot.slane %v3063, 4
      %v3065 = vrot.slane %v2243, 5
      %v3066 = vsel %vm1386, %v3064, %v3065
      %v3067 = vrot.slane %v3065, 4
      %v3068 = vrot.slane %v2244, 5
      %v3069 = vsel %vm1386, %v3067, %v3068
      %v3070 = vrot.slane %v2994, 5
      %v3071 = vrot.slane %v3070, 4
      %v3072 = vrot.slane %v2246, 5
      %v3073 = vsel %vm1386, %v3071, %v3072
      %v3074 = vrot.slane %v3072, 4
      %v3075 = vrot.slane %v2247, 5
      %v3076 = vsel %vm1386, %v3074, %v3075
      %v3077 = vrot.slane %v2995, 5
      %v3078 = vrot.slane %v3077, 4
      %v3079 = vrot.slane %v2249, 5
      %v3080 = vsel %vm1386, %v3078, %v3079
      %v3081 = vrot.slane %v3079, 4
      %v3082 = vrot.slane %v2250, 5
      %v3083 = vsel %vm1386, %v3081, %v3082
      %v3084 = vrot.slane %v2996, 5
      %v3085 = vrot.slane %v3084, 4
      %v3086 = vrot.slane %v2252, 5
      %v3087 = vsel %vm1386, %v3085, %v3086
      %v3088 = vrot.slane %v3086, 4
      %v3089 = vrot.slane %v2253, 5
      %v3090 = vsel %vm1386, %v3088, %v3089
      %v3091 = vrot.slane %v2997, 5
      %v3092 = vrot.slane %v3091, 4
      %v3093 = vrot.slane %v2255, 5
      %v3094 = vsel %vm1386, %v3092, %v3093
      %v3095 = vrot.slane %v3093, 4
      %v3096 = vrot.slane %v2256, 5
      %v3097 = vsel %vm1386, %v3095, %v3096
      %v3098 = vrot.slane %v2998, 5
      %v3099 = vrot.slane %v3098, 4
      %v3100 = vrot.slane %v2258, 5
      %v3101 = vsel %vm1386, %v3099, %v3100
      %v3102 = vrot.slane %v3100, 4
      %v3103 = vrot.slane %v2259, 5
      %v3104 = vsel %vm1386, %v3102, %v3103
      %v3105 = vrot.slane %v2999, 5
      %v3106 = vrot.slane %v3105, 4
      %v3107 = vrot.slane %v2261, 5
      %v3108 = vsel %vm1386, %v3106, %v3107
      %v3109 = vrot.slane %v3107, 4
      %v3110 = vrot.slane %v2262, 5
      %v3111 = vsel %vm1386, %v3109, %v3110
      %v3112 = vrot.slane %v3000, 5
      %v3113 = vrot.slane %v3112, 4
      %v3114 = vrot.slane %v2264, 5
      %v3115 = vsel %vm1386, %v3113, %v3114
      %v3116 = vrot.slane %v3114, 4
      %v3117 = vrot.slane %v2265, 5
      %v3118 = vsel %vm1386, %v3116, %v3117
      %v3119 = vrot.slane %v3001, 5
      %v3120 = vrot.slane %v3119, 4
      %v3121 = vrot.slane %v2267, 5
      %v3122 = vsel %vm1386, %v3120, %v3121
      %v3123 = vrot.slane %v3121, 4
      %v3124 = vrot.slane %v2268, 5
      %v3125 = vsel %vm1386, %v3123, %v3124
      %v3126 = vrot.slane %v3002, 5
      %v3127 = vrot.slane %v3126, 4
      %v3128 = vrot.slane %v2270, 5
      %v3129 = vsel %vm1386, %v3127, %v3128
      %v3130 = vrot.slane %v3128, 4
      %v3131 = vrot.slane %v2271, 5
      %v3132 = vsel %vm1386, %v3130, %v3131
      %v3133 = vrot.slane %v3003, 5
      %v3134 = vrot.slane %v3133, 4
      %v3135 = vrot.slane %v2273, 5
      %v3136 = vsel %vm1386, %v3134, %v3135
      %v3137 = vrot.slane %v3135, 4
      %v3138 = vrot.slane %v2274, 5
      %v3139 = vsel %vm1386, %v3137, %v3138
      %v3140 = vrot.slane %v3004, 5
      %v3141 = vrot.slane %v3140, 4
      %v3142 = vrot.slane %v2276, 5
      %v3143 = vsel %vm1386, %v3141, %v3142
      %v3144 = vrot.slane %v3142, 4
      %v3145 = vrot.slane %v2277, 5
      %v3146 = vsel %vm1386, %v3144, %v3145
      %v3147 = vrot.slane %v3005, 5
      %v3148 = vrot.slane %v3147, 4
      %v3149 = vrot.slane %v2279, 5
      %v3150 = vsel %vm1386, %v3148, %v3149
      %v3151 = vrot.slane %v3149, 4
      %v3152 = vrot.slane %v2280, 5
      %v3153 = vsel %vm1386, %v3151, %v3152
      %v3154 = vrot.slane %v3006, 5
      %v3155 = vrot.slane %v3154, 4
      %v3156 = vrot.slane %v2282, 5
      %v3157 = vsel %vm1386, %v3155, %v3156
      %v3158 = vrot.slane %v3156, 4
      %v3159 = vrot.slane %v2283, 5
      %v3160 = vsel %vm1386, %v3158, %v3159
      %v3161 = vrot.slane %v3007, 5
      %v3162 = vrot.slane %v3161, 4
      %v3163 = vrot.slane %v2285, 5
      %v3164 = vsel %vm1386, %v3162, %v3163
      %v3165 = vrot.slane %v3163, 4
      %v3166 = vrot.slane %v2286, 5
      %v3167 = vsel %vm1386, %v3165, %v3166
      %v3168 = vld [vmem:[%s1885 + $0x80] sm:$0xf]
      %v3169 = vld [vmem:[%s1885 + $0x84] sm:$0xf]
      %v3170 = vld [vmem:[%s1885 + $0x88] sm:$0xf]
      %v3171 = vld [vmem:[%s1885 + $0x8c] sm:$0xf]
      %v3172 = vld [vmem:[%s1885 + $0x90] sm:$0xf]
      %v3173 = vld [vmem:[%s1885 + $0x94] sm:$0xf]
      %v3174 = vld [vmem:[%s1885 + $0x98] sm:$0xf]
      %v3175 = vld [vmem:[%s1885 + $0x9c] sm:$0xf]
      %v3176 = vld [vmem:[%s1885 + $0xa0] sm:$0xf]
      %v3177 = vld [vmem:[%s1885 + $0xa4] sm:$0xf]
      %v3178 = vld [vmem:[%s1885 + $0xa8] sm:$0xf]
      %v3179 = vld [vmem:[%s1885 + $0xac] sm:$0xf]
      %v3180 = vld [vmem:[%s1885 + $0xb0] sm:$0xf]
      %v3181 = vld [vmem:[%s1885 + $0xb4] sm:$0xf]
      %v3182 = vld [vmem:[%s1885 + $0xb8] sm:$0xf]
      %v3183 = vld [vmem:[%s1885 + $0xbc] sm:$0xf]
      %v3184 = vunpack.c.l.b16 %v3059
      %v3185 = vunpack.c.l.b16 %v3062
      %v3186 = vunpack.c.l.b16 %v3066
      %v3187 = vunpack.c.l.b16 %v3069
      %v3188 = vunpack.c.l.b16 %v3073
      %v3189 = vunpack.c.l.b16 %v3076
      %v3190 = vunpack.c.l.b16 %v3080
      %v3191 = vunpack.c.l.b16 %v3083
      %v3192 = vunpack.c.l.b16 %v3087
      %v3193 = vunpack.c.l.b16 %v3090
      %v3194 = vunpack.c.l.b16 %v3094
      %v3195 = vunpack.c.l.b16 %v3097
      %v3196 = vunpack.c.l.b16 %v3101
      %v3197 = vunpack.c.l.b16 %v3104
      %v3198 = vunpack.c.l.b16 %v3108
      %v3199 = vunpack.c.l.b16 %v3111
      %v3200 = vunpack.c.l.b16 %v3115
      %v3201 = vunpack.c.l.b16 %v3118
      %v3202 = vunpack.c.l.b16 %v3122
      %v3203 = vunpack.c.l.b16 %v3125
      %v3204 = vunpack.c.l.b16 %v3129
      %v3205 = vunpack.c.l.b16 %v3132
      %v3206 = vunpack.c.l.b16 %v3136
      %v3207 = vunpack.c.l.b16 %v3139
      %v3208 = vunpack.c.l.b16 %v3143
      %v3209 = vunpack.c.l.b16 %v3146
      %v3210 = vunpack.c.l.b16 %v3150
      %v3211 = vunpack.c.l.b16 %v3153
      %v3212 = vunpack.c.l.b16 %v3157
      %v3213 = vunpack.c.l.b16 %v3160
      %v3214 = vunpack.c.l.b16 %v3164
      %v3215 = vunpack.c.l.b16 %v3167
      %v3216 = vpack.c.b16 %v3185, %v3184
      %v3217 = vpack.c.b16 %v3187, %v3186
      %v3218 = vpack.c.b16 %v3189, %v3188
      %v3219 = vpack.c.b16 %v3191, %v3190
      %v3220 = vpack.c.b16 %v3193, %v3192
      %v3221 = vpack.c.b16 %v3195, %v3194
      %v3222 = vpack.c.b16 %v3197, %v3196
      %v3223 = vpack.c.b16 %v3199, %v3198
      %v3224 = vpack.c.b16 %v3201, %v3200
      %v3225 = vpack.c.b16 %v3203, %v3202
      %v3226 = vpack.c.b16 %v3205, %v3204
      %v3227 = vpack.c.b16 %v3207, %v3206
      %v3228 = vpack.c.b16 %v3209, %v3208
      %v3229 = vpack.c.b16 %v3211, %v3210
      %v3230 = vpack.c.b16 %v3213, %v3212
      %v3231 = vpack.c.b16 %v3215, %v3214
      %v3264 = vunpack.c.l.b16 %v3168
      %v3265 = vunpack.c.l.b16 %v3169
      %v3266 = vunpack.c.l.b16 %v3170
      %v3267 = vunpack.c.l.b16 %v3171
      %v3268 = vunpack.c.l.b16 %v3172
      %v3269 = vunpack.c.l.b16 %v3173
      %v3270 = vunpack.c.l.b16 %v3174
      %v3271 = vunpack.c.l.b16 %v3175
      %v3272 = vunpack.c.l.b16 %v3176
      %v3273 = vunpack.c.l.b16 %v3177
      %v3274 = vunpack.c.l.b16 %v3178
      %v3275 = vunpack.c.l.b16 %v3179
      %v3276 = vunpack.c.l.b16 %v3180
      %v3277 = vunpack.c.l.b16 %v3181
      %v3278 = vunpack.c.l.b16 %v3182
      %v3279 = vunpack.c.l.b16 %v3183
      %v3280 = vpack.c.b16 %v3265, %v3264
      %v3281 = vpack.c.b16 %v3267, %v3266
      %v3282 = vpack.c.b16 %v3269, %v3268
      %v3283 = vpack.c.b16 %v3271, %v3270
      %v3284 = vpack.c.b16 %v3273, %v3272
      %v3285 = vpack.c.b16 %v3275, %v3274
      %v3286 = vpack.c.b16 %v3277, %v3276
      %v3287 = vpack.c.b16 %v3279, %v3278
      %3296 = vmatprep.subr.bf16.mxu0 0
      %3297 = vmatpush1.bf16.msra.mxu0 %v3280
      %3298 = vmatprep.subr.bf16.mxu0 0
      %3299 = vmatpush1.bf16.msra.mxu0 %v3281
      %3300 = vmatprep.subr.bf16.mxu0 0
      %3301 = vmatpush1.bf16.msra.mxu0 %v3282
      %3302 = vmatprep.subr.bf16.mxu0 0
      %3303 = vmatpush1.bf16.msra.mxu0 %v3283
      %3304 = vmatprep.subr.bf16.mxu0 0
      %3305 = vmatpush1.bf16.msra.mxu0 %v3284
      %3306 = vmatprep.subr.bf16.mxu0 0
      %3307 = vmatpush1.bf16.msra.mxu0 %v3285
      %3308 = vmatprep.subr.bf16.mxu0 0
      %3309 = vmatpush1.bf16.msra.mxu0 %v3286
      %3310 = vmatprep.subr.bf16.mxu0 0
      %3311 = vmatpush1.bf16.msra.mxu0 %v3287
      %3312 = vmatprep.subr.bf16.mxu0 0
      %3313 = vmatpush1.bf16.msra.mxu0 0
      %3314 = vmatprep.subr.bf16.mxu0 0
      %3315 = vmatpush1.bf16.msra.mxu0 0
      %3316 = vmatprep.subr.bf16.mxu0 0
      %3317 = vmatpush1.bf16.msra.mxu0 0
      %3318 = vmatprep.subr.bf16.mxu0 0
      %3319 = vmatpush1.bf16.msra.mxu0 0
      %3320 = vmatprep.subr.bf16.mxu0 0
      %3321 = vmatpush1.bf16.msra.mxu0 0
      %3322 = vmatprep.subr.bf16.mxu0 0
      %3323 = vmatpush1.bf16.msra.mxu0 0
      %3324 = vmatprep.subr.bf16.mxu0 0
      %3325 = vmatpush1.bf16.msra.mxu0 0
      %3326 = vmatprep.subr.bf16.mxu0 0
      %3327 = vmatpush1.bf16.msra.mxu0 0
      %3328 = vmatprep.mubr.bf16.mxu0 0
      %3329 = vmatmul.mubr.bf16.gmra.mrb[0].mxu0 %v3216
      %v3330 = vpop.f32.mrb[0].mxu0
      %v3331 = vadd.f32 0.0, %v3330
      %v3332 = vpop.f32.mrb[0].mxu0
      %v3333 = vpop.f32.mrb[0].mxu0
      %v3334 = vadd.f32 0.0, %v3333
      %v3335 = vpop.f32.mrb[0].mxu0
      %3336 = vmatprep.mubr.bf16.mxu0 0
      %3337 = vmatmul.mubr.bf16.gmra.mrb[0].mxu0 %v3217
      %v3338 = vpop.f32.mrb[0].mxu0
      %v3339 = vadd.f32 0.0, %v3338
      %v3340 = vpop.f32.mrb[0].mxu0
      %v3341 = vpop.f32.mrb[0].mxu0
      %v3342 = vadd.f32 0.0, %v3341
      %v3343 = vpop.f32.mrb[0].mxu0
      %3344 = vmatprep.mubr.bf16.mxu0 0
      %3345 = vmatmul.mubr.bf16.gmra.mrb[0].mxu0 %v3218
      %v3346 = vpop.f32.mrb[0].mxu0
      %v3347 = vadd.f32 0.0, %v3346
      %v3348 = vpop.f32.mrb[0].mxu0
      %v3349 = vpop.f32.mrb[0].mxu0
      %v3350 = vadd.f32 0.0, %v3349
      %v3351 = vpop.f32.mrb[0].mxu0
      %3352 = vmatprep.mubr.bf16.mxu0 0
      %3353 = vmatmul.mubr.bf16.gmra.mrb[0].mxu0 %v3219
      %v3354 = vpop.f32.mrb[0].mxu0
      %v3355 = vadd.f32 0.0, %v3354
      %v3356 = vpop.f32.mrb[0].mxu0
      %v3357 = vpop.f32.mrb[0].mxu0
      %v3358 = vadd.f32 0.0, %v3357
      %v3359 = vpop.f32.mrb[0].mxu0
      %3360 = vmatprep.mubr.bf16.mxu0 0
      %3361 = vmatmul.mubr.bf16.gmra.mrb[0].mxu0 %v3220
      %v3362 = vpop.f32.mrb[0].mxu0
      %v3363 = vadd.f32 0.0, %v3362
      %v3364 = vpop.f32.mrb[0].mxu0
      %v3365 = vpop.f32.mrb[0].mxu0
      %v3366 = vadd.f32 0.0, %v3365
      %v3367 = vpop.f32.mrb[0].mxu0
      %3368 = vmatprep.mubr.bf16.mxu0 0
      %3369 = vmatmul.mubr.bf16.gmra.mrb[0].mxu0 %v3221
      %v3370 = vpop.f32.mrb[0].mxu0
      %v3371 = vadd.f32 0.0, %v3370
      %v3372 = vpop.f32.mrb[0].mxu0
      %v3373 = vpop.f32.mrb[0].mxu0
      %v3374 = vadd.f32 0.0, %v3373
      %v3375 = vpop.f32.mrb[0].mxu0
      %3376 = vmatprep.mubr.bf16.mxu0 0
      %3377 = vmatmul.mubr.bf16.gmra.mrb[0].mxu0 %v3222
      %v3378 = vpop.f32.mrb[0].mxu0
      %v3379 = vadd.f32 0.0, %v3378
      %v3380 = vpop.f32.mrb[0].mxu0
      %v3381 = vpop.f32.mrb[0].mxu0
      %v3382 = vadd.f32 0.0, %v3381
      %v3383 = vpop.f32.mrb[0].mxu0
      %3384 = vmatprep.mubr.bf16.mxu0 0
      %3385 = vmatmul.mubr.bf16.gmra.mrb[0].mxu0 %v3223
      %v3386 = vpop.f32.mrb[0].mxu0
      %v3387 = vadd.f32 0.0, %v3386
      %v3388 = vpop.f32.mrb[0].mxu0
      %v3389 = vpop.f32.mrb[0].mxu0
      %v3390 = vadd.f32 0.0, %v3389
      %v3391 = vpop.f32.mrb[0].mxu0
      %3392 = vmatprep.mubr.bf16.mxu0 0
      %3393 = vmatmul.mubr.bf16.gmra.mrb[0].mxu0 %v3224
      %v3394 = vpop.f32.mrb[0].mxu0
      %v3395 = vadd.f32 0.0, %v3394
      %v3396 = vpop.f32.mrb[0].mxu0
      %v3397 = vpop.f32.mrb[0].mxu0
      %v3398 = vadd.f32 0.0, %v3397
      %v3399 = vpop.f32.mrb[0].mxu0
      %3400 = vmatprep.mubr.bf16.mxu0 0
      %3401 = vmatmul.mubr.bf16.gmra.mrb[0].mxu0 %v3225
      %v3402 = vpop.f32.mrb[0].mxu0
      %v3403 = vadd.f32 0.0, %v3402
      %v3404 = vpop.f32.mrb[0].mxu0
      %v3405 = vpop.f32.mrb[0].mxu0
      %v3406 = vadd.f32 0.0, %v3405
      %v3407 = vpop.f32.mrb[0].mxu0
      %3408 = vmatprep.mubr.bf16.mxu0 0
      %3409 = vmatmul.mubr.bf16.gmra.mrb[0].mxu0 %v3226
      %v3410 = vpop.f32.mrb[0].mxu0
      %v3411 = vadd.f32 0.0, %v3410
      %v3412 = vpop.f32.mrb[0].mxu0
      %v3413 = vpop.f32.mrb[0].mxu0
      %v3414 = vadd.f32 0.0, %v3413
      %v3415 = vpop.f32.mrb[0].mxu0
      %3416 = vmatprep.mubr.bf16.mxu0 0
      %3417 = vmatmul.mubr.bf16.gmra.mrb[0].mxu0 %v3227
      %v3418 = vpop.f32.mrb[0].mxu0
      %v3419 = vadd.f32 0.0, %v3418
      %v3420 = vpop.f32.mrb[0].mxu0
      %v3421 = vpop.f32.mrb[0].mxu0
      %v3422 = vadd.f32 0.0, %v3421
      %v3423 = vpop.f32.mrb[0].mxu0
      %3424 = vmatprep.mubr.bf16.mxu0 0
      %3425 = vmatmul.mubr.bf16.gmra.mrb[0].mxu0 %v3228
      %v3426 = vpop.f32.mrb[0].mxu0
      %v3427 = vadd.f32 0.0, %v3426
      %v3428 = vpop.f32.mrb[0].mxu0
      %v3429 = vpop.f32.mrb[0].mxu0
      %v3430 = vadd.f32 0.0, %v3429
      %v3431 = vpop.f32.mrb[0].mxu0
      %3432 = vmatprep.mubr.bf16.mxu0 0
      %3433 = vmatmul.mubr.bf16.gmra.mrb[0].mxu0 %v3229
      %v3434 = vpop.f32.mrb[0].mxu0
      %v3435 = vadd.f32 0.0, %v3434
      %v3436 = vpop.f32.mrb[0].mxu0
      %v3437 = vpop.f32.mrb[0].mxu0
      %v3438 = vadd.f32 0.0, %v3437
      %v3439 = vpop.f32.mrb[0].mxu0
      %3440 = vmatprep.mubr.bf16.mxu0 0
      %3441 = vmatmul.mubr.bf16.gmra.mrb[0].mxu0 %v3230
      %v3442 = vpop.f32.mrb[0].mxu0
      %v3443 = vadd.f32 0.0, %v3442
      %v3444 = vpop.f32.mrb[0].mxu0
      %v3445 = vpop.f32.mrb[0].mxu0
      %v3446 = vadd.f32 0.0, %v3445
      %v3447 = vpop.f32.mrb[0].mxu0
      %3448 = vmatprep.mubr.bf16.mxu0 0
      %3449 = vmatmul.mubr.bf16.gmra.mrb[0].mxu0 %v3231
      %v3450 = vpop.f32.mrb[0].mxu0
      %v3451 = vadd.f32 0.0, %v3450
      %v3452 = vpop.f32.mrb[0].mxu0
      %v3453 = vpop.f32.mrb[0].mxu0
      %v3454 = vadd.f32 0.0, %v3453
      %v3455 = vpop.f32.mrb[0].mxu0
      %3456 = vdwg.mxu0
      %v3457 = vadd.f32 %v2960, %v3331
      %v3458 = vadd.f32 %v2961, %v3334
      %v3459 = vadd.f32 %v2962, %v3339
      %v3460 = vadd.f32 %v2963, %v3342
      %v3461 = vadd.f32 %v2964, %v3347
      %v3462 = vadd.f32 %v2965, %v3350
      %v3463 = vadd.f32 %v2966, %v3355
      %v3464 = vadd.f32 %v2967, %v3358
      %v3465 = vadd.f32 %v2968, %v3363
      %v3466 = vadd.f32 %v2969, %v3366
      %v3467 = vadd.f32 %v2970, %v3371
      %v3468 = vadd.f32 %v2971, %v3374
      %v3469 = vadd.f32 %v2972, %v3379
      %v3470 = vadd.f32 %v2973, %v3382
      %v3471 = vadd.f32 %v2974, %v3387
      %v3472 = vadd.f32 %v2975, %v3390
      %v3473 = vadd.f32 %v2976, %v3395
      %v3474 = vadd.f32 %v2977, %v3398
      %v3475 = vadd.f32 %v2978, %v3403
      %v3476 = vadd.f32 %v2979, %v3406
      %v3477 = vadd.f32 %v2980, %v3411
      %v3478 = vadd.f32 %v2981, %v3414
      %v3479 = vadd.f32 %v2982, %v3419
      %v3480 = vadd.f32 %v2983, %v3422
      %v3481 = vadd.f32 %v2984, %v3427
      %v3482 = vadd.f32 %v2985, %v3430
      %v3483 = vadd.f32 %v2986, %v3435
      %v3484 = vadd.f32 %v2987, %v3438
      %v3485 = vadd.f32 %v2988, %v3443
      %v3486 = vadd.f32 %v2989, %v3446
      %v3487 = vadd.f32 %v2990, %v3451
      %v3488 = vadd.f32 %v2991, %v3454
      %s3489 = scalar_lea.vmem %s170, 256
      %3490 = vst [vmem:[%s3489] sm:$0xff] %v3457
      %3491 = vst [vmem:[%s3489 + $0x8] sm:$0xff] %v3458
      %3492 = vst [vmem:[%s3489 + $0x10] sm:$0xff] %v3459
      %3493 = vst [vmem:[%s3489 + $0x18] sm:$0xff] %v3460
      %3494 = vst [vmem:[%s3489 + $0x20] sm:$0xff] %v3461
      %3495 = vst [vmem:[%s3489 + $0x28] sm:$0xff] %v3462
      %3496 = vst [vmem:[%s3489 + $0x30] sm:$0xff] %v3463
      %3497 = vst [vmem:[%s3489 + $0x38] sm:$0xff] %v3464
      %3498 = vst [vmem:[%s3489 + $0x40] sm:$0xff] %v3465
      %3499 = vst [vmem:[%s3489 + $0x48] sm:$0xff] %v3466
      %3500 = vst [vmem:[%s3489 + $0x50] sm:$0xff] %v3467
      %3501 = vst [vmem:[%s3489 + $0x58] sm:$0xff] %v3468
      %3502 = vst [vmem:[%s3489 + $0x60] sm:$0xff] %v3469
      %3503 = vst [vmem:[%s3489 + $0x68] sm:$0xff] %v3470
      %3504 = vst [vmem:[%s3489 + $0x70] sm:$0xff] %v3471
      %3505 = vst [vmem:[%s3489 + $0x78] sm:$0xff] %v3472
      %3506 = vst [vmem:[%s3489 + $0x80] sm:$0xff] %v3473
      %3507 = vst [vmem:[%s3489 + $0x88] sm:$0xff] %v3474
      %3508 = vst [vmem:[%s3489 + $0x90] sm:$0xff] %v3475
      %3509 = vst [vmem:[%s3489 + $0x98] sm:$0xff] %v3476
      %3510 = vst [vmem:[%s3489 + $0xa0] sm:$0xff] %v3477
      %3511 = vst [vmem:[%s3489 + $0xa8] sm:$0xff] %v3478
      %3512 = vst [vmem:[%s3489 + $0xb0] sm:$0xff] %v3479
      %3513 = vst [vmem:[%s3489 + $0xb8] sm:$0xff] %v3480
      %3514 = vst [vmem:[%s3489 + $0xc0] sm:$0xff] %v3481
      %3515 = vst [vmem:[%s3489 + $0xc8] sm:$0xff] %v3482
      %3516 = vst [vmem:[%s3489 + $0xd0] sm:$0xff] %v3483
      %3517 = vst [vmem:[%s3489 + $0xd8] sm:$0xff] %v3484
      %3518 = vst [vmem:[%s3489 + $0xe0] sm:$0xff] %v3485
      %3519 = vst [vmem:[%s3489 + $0xe8] sm:$0xff] %v3486
      %3520 = vst [vmem:[%s3489 + $0xf0] sm:$0xff] %v3487
      %3521 = vst [vmem:[%s3489 + $0xf8] sm:$0xff] %v3488
      %p3522 = scmp.lt.s32.totalorder %s14, 1
      %s3523 = scalar_select %p3522, %s14, 1
      %s3524 = smul.addr %s3523, 64
      %s3525 = smul.addr %s3524, 8
      %s3526 = scalar_lea.vmem %s3, %s3525
      // Predicated region
      $region33: #{upsample_forward.1} parent=31 // pred_check
        %p3527 = pneg %p100
      $region34: #{upsample_forward.1} parent=31 // pred_check_branch
        %3529 = sbr.rel (%p3527) target = $region36
      $region35: #{upsample_forward.1} parent=31 // pred_region
        _
      $region36: #{upsample_forward.1} parent=31 // pred_fallthru
        _
    $region32: #{upsample_forward.1} parent=5 // pred_fallthru
      _
    %p3530 = scmp.le.s32.totalorder 2, %s9
    // Predicated region
    $region37: #{upsample_forward.1} parent=5 // pred_check
      %p3531 = pneg %p3530
    $region38: #{upsample_forward.1} parent=5 // pred_check_branch
      %3533 = sbr.rel (%p3531) target = $region40
    $region39: #{upsample_forward.1} parent=5 // pred_region
      %s3534 = ssub.s32 %s9, 2
      // Predicated region
      $region41: #{upsample_forward.1} parent=39 // pred_check
        %p3535 = pneg %p106
      $region42: #{upsample_forward.1} parent=39 // pred_check_branch
        %3537 = sbr.rel (%p3535) target = $region44
      $region43: #{upsample_forward.1} parent=39 // pred_region
        %p3538 = scmp.lt.s32.totalorder %s15, 1
        %s3539 = scalar_select %p3538, %s15, 1
        %s3540 = smul.addr %s3539, 64
        %s3541 = smul.addr %s3540, 8
        %s3542 = scalar_lea.vmem %s3, %s3541
      $region44: #{upsample_forward.1} parent=39 // pred_fallthru
        _
    $region40: #{upsample_forward.1} parent=5 // pred_fallthru
      _
  $region6: #{upsample_forward.1} parent=0 // loop_footer
    %s13 = sadd.s32 1, %s9
  $region7: #{upsample_forward.1} parent=0 // loop_footer_branch
    %8 = sbr.rel target = $region3
  $region8: #{upsample_forward.1} parent=0 // loop_exit
    _

</llo_original>
